<compile_context>
chip_gen: v7x
topology: tpu7x:2x2x1
jax: 0.10.0
libtpu: 0.0.40
codegen_flags: <defaults>
</compile_context>

<pallas_src>
import functools

import jax
import jax.numpy as jnp
from jax import lax
from jax.experimental import pallas as pl
from jax.experimental.pallas import tpu as pltpu


# ----------------------------- kernel ---------------------------------------


def _fused_attention_kernel(x_ref, wqkv_ref, wproj_ref, bproj_ref, o_ref,
                            merged_ref, *, num_heads, scale):
    """One batch element per grid step: fully fused attention forward."""
    x = x_ref[0]                                   # (N, C), compute dtype
    N, C = x.shape
    H = num_heads
    Dh = C // H

    # ---- qkv projection: (N, C) · (3C, C) -> (N, 3C)  (== x @ W_qkv.T) ------
    qkv = lax.dot_general(
        x, wqkv_ref[...],
        dimension_numbers=(((1,), (1,)), ((), ())),
        preferred_element_type=jnp.float32,
    ).astype(x.dtype)   # back to compute dtype for the per-head MXU calls

    # ---- per-head scaled-dot-product attention (all H heads this step) ------
    # TODO(synk): for Dh < 128 on v6e/v7x, process heads in 128-lane groups with
    # a batched dot_general to avoid lane-masked per-head slices / improve MXU
    # K-dim fill.
    for h in range(H):                             # static unroll (H MXU calls)
        q_h = qkv[:, h * Dh:(h + 1) * Dh] * scale          # scale folded into q
        k_h = qkv[:, C + h * Dh:C + (h + 1) * Dh]          # (N, Dh)
        v_h = qkv[:, 2 * C + h * Dh:2 * C + (h + 1) * Dh]  # (N, Dh)

        # scores: contract Dh of q against Dh of k — no k transpose needed.
        s = lax.dot_general(
            q_h, k_h,
            dimension_numbers=(((1,), (1,)), ((), ())),
            preferred_element_type=jnp.float32,
        )                                                   # (N, N) f32

        # softmax over keys; exp directly in the PV dtype (bf16 EUP on v6e/v7x
        # when the compute dtype is bf16), statistics in f32. Normalization is
        # deferred to the (N, Dh) output via an EUP reciprocal.
        m = jnp.max(s, axis=-1, keepdims=True)
        e = jnp.exp((s - m).astype(v_h.dtype))              # (N, N)
        l = jnp.sum(e.astype(jnp.float32), axis=-1, keepdims=True)  # (N, 1) f32

        o_h = jnp.dot(e, v_h, preferred_element_type=jnp.float32)   # (N, Dh) f32
        o_h = o_h * pl.reciprocal(l, approx=True)

        # write this head's output into the merged-head scratch slab; frees the
        # head's vregs before the next head starts (no jnp.concatenate copy).
        merged_ref[:, h * Dh:(h + 1) * Dh] = o_h.astype(merged_ref.dtype)

    # ---- output projection + bias:  merged (N, C) · (C, C)^T + b ------------
    y = lax.dot_general(
        merged_ref[...], wproj_ref[...],
        dimension_numbers=(((1,), (1,)), ((), ())),
        preferred_element_type=jnp.float32,
    )                                                       # (N, C) f32
    o_ref[0] = (y + bproj_ref[...]).astype(o_ref.dtype)


# ----------------------------- wrapper ---------------------------------------


def _round_up(v, m):
    return (v + m - 1) // m * m


def _padded_bytes(shape, dtype):
    """Upper-bound VMEM bytes for an array padded to the (8, 128) vreg tile."""
    dims = list(shape)
    dims[-1] = _round_up(dims[-1], 128)
    if len(dims) >= 2:
        dims[-2] = _round_up(dims[-2], 8)
    n = 1
    for d in dims:
        n *= d
    return n * jnp.dtype(dtype).itemsize


def _resident_spec(shape):
    """BlockSpec for an input whose block never changes across the grid.

    Single-buffered: double-buffering a constant block only doubles its VMEM
    footprint (the difference between fitting and not fitting scoped VMEM for
    production ViT channel counts).
    """
    index_map = lambda b: (0,) * len(shape)
    try:
        return pl.BlockSpec(shape, index_map, pipeline_mode=pl.Buffered(1))
    except TypeError:  # older jax without pipeline_mode: fall back to default
        return pl.BlockSpec(shape, index_map)


def attention_forward(x, w_qkv, w_proj, b_proj, *, num_heads,
                      compute_dtype=jnp.bfloat16):
    """Pallas implementation of Attention.forward.

    x:      (B, N, C)
    w_qkv:  (3C, C)   (qkv_bias=False, module default → no qkv bias)
    w_proj: (C, C)
    b_proj: (C,)
    compute_dtype: dtype fed to the MXU (bf16 by default; None = keep x.dtype).
                   Accumulation is always f32; the output keeps x.dtype.
    """
    B, N, C = x.shape
    assert C % num_heads == 0
    Dh = C // num_heads
    scale = Dh ** (-0.5)
    out_dtype = x.dtype

    cdt = jnp.dtype(compute_dtype) if compute_dtype is not None else jnp.dtype(x.dtype)
    xk = x.astype(cdt)
    wqkv = w_qkv.astype(cdt)
    wproj = w_proj.astype(cdt)
    bproj = b_proj.reshape(1, C).astype(cdt)   # 2-D ref is friendlier for TPU layout

    kernel = functools.partial(
        _fused_attention_kernel, num_heads=num_heads, scale=scale)

    # Explicit VMEM budget: double-buffered x/out blocks + single-buffered
    # resident weights + in-kernel intermediates, with ~30% headroom.
    footprint = (
        2 * _padded_bytes((N, C), cdt)             # x block (double-buffered)
        + 2 * _padded_bytes((N, C), out_dtype)     # out block (double-buffered)
        + _padded_bytes((3 * C, C), cdt)           # W_qkv (single-buffered)
        + _padded_bytes((C, C), cdt)               # W_proj (single-buffered)
        + _padded_bytes((1, C), cdt)               # bias
        + _padded_bytes((N, 3 * C), cdt)           # qkv slab
        + _padded_bytes((N, N), jnp.float32)       # per-head scores (f32)
        + _padded_bytes((N, N), cdt)               # per-head exp
        + _padded_bytes((N, C), cdt)               # merged-head scratch
        + _padded_bytes((N, C), jnp.float32)       # proj accumulator
    )
    vmem_limit = int(min(max(int(footprint * 1.3), 32 * 1024 * 1024),
                         100 * 1024 * 1024))

    # TODO(synk): for long sequences / v7x's 64 MiB VMEM, add a query-tile grid
    # axis (grid=(B, N//TQ)) with an online-softmax KV loop instead of
    # materializing the full (N, 3C) qkv slab and per-head (N, N) scores; that
    # second parallel axis also lets v7x shard across both TensorCores when B
    # is small.
    return pl.pallas_call(
        kernel,
        out_shape=jax.ShapeDtypeStruct((B, N, C), out_dtype),
        grid_spec=pltpu.PrefetchScalarGridSpec(
            num_scalar_prefetch=0,
            grid=(B,),
            in_specs=[
                pl.BlockSpec((1, N, C), lambda b: (b, 0, 0)),   # per-batch x
                _resident_spec((3 * C, C)),                     # W_qkv (resident)
                _resident_spec((C, C)),                         # W_proj (resident)
                _resident_spec((1, C)),                         # bias (resident)
            ],
            out_specs=pl.BlockSpec((1, N, C), lambda b: (b, 0, 0)),
            scratch_shapes=[pltpu.VMEM((N, C), cdt)],           # merged heads
        ),
        compiler_params=pltpu.CompilerParams(
            dimension_semantics=("parallel",),
            vmem_limit_bytes=vmem_limit,
        ),
    )(xk, wqkv, wproj, bproj)


# ----------------------------- reference --------------------------------------


def attention_reference(x, w_qkv, w_proj, b_proj, *, num_heads):
    B, N, C = x.shape
    H = num_heads
    Dh = C // H
    scale = Dh ** (-0.5)
    qkv = x @ w_qkv.T
    qkv = qkv.reshape(B, N, 3, H, Dh).transpose(2, 0, 3, 1, 4)
    q, k, v = qkv[0], qkv[1], qkv[2]
    attn = jnp.einsum("bhnd,bhmd->bhnm", q, k) * scale
    attn = jax.nn.softmax(attn, axis=-1)
    o = jnp.einsum("bhnm,bhmd->bhnd", attn, v)
    o = o.transpose(0, 2, 1, 3).reshape(B, N, C)
    return o @ w_proj.T + b_proj


# ----------------------------- main -------------------------------------------


if __name__ == "__main__":
    B, N, C, H = 2, 8, 32, 8  # small demo shapes; head_dim = 4

    key = jax.random.PRNGKey(0)
    kx, kqkv, kproj, kb = jax.random.split(key, 4)

    x = jax.random.normal(kx, (B, N, C), dtype=jnp.float32)
    w_qkv = jax.random.normal(kqkv, (3 * C, C), dtype=jnp.float32) * 0.02
    w_proj = jax.random.normal(kproj, (C, C), dtype=jnp.float32) * 0.02
    b_proj = jax.random.normal(kb, (C,), dtype=jnp.float32) * 0.02

    ref = attention_reference(x, w_qkv, w_proj, b_proj, num_heads=H)

    # Default bf16 compute path (MXU-native on v6e/v7x, halves VMEM/HBM traffic).
    out_bf16 = attention_forward(x, w_qkv, w_proj, b_proj, num_heads=H)
    out_bf16 = jax.block_until_ready(out_bf16)
    assert out_bf16.shape == (B, N, C)
    assert jnp.allclose(out_bf16, ref, atol=3e-2, rtol=3e-2), \
        "bf16 path mismatch vs reference"

    # Full-precision path (compute_dtype=None keeps the input dtype end-to-end).
    out_f32 = attention_forward(x, w_qkv, w_proj, b_proj, num_heads=H,
                                compute_dtype=None)
    out_f32 = jax.block_until_ready(out_f32)
    # tolerance loosened slightly for the approximate EUP reciprocal in the
    # softmax normalization.
    assert jnp.allclose(out_f32, ref, atol=1e-3, rtol=1e-2), \
        "f32 path mismatch vs reference"

    print("KERNEL_OK")
</pallas_src>

<mosaic_0001>
module attributes {stable_mosaic.version = 11 : i64} {
  func.func @_fused_attention_kernel(%arg0: i32, %arg1: memref<1x8x32xbf16, #tpu.memory_space<vmem>>, %arg2: memref<96x32xbf16, #tpu.memory_space<vmem>>, %arg3: memref<32x32xbf16, #tpu.memory_space<vmem>>, %arg4: memref<1x32xbf16, #tpu.memory_space<vmem>>, %arg5: memref<1x8x32xf32, #tpu.memory_space<vmem>>, %arg6: memref<8x32xbf16, #tpu.memory_space<vmem>>) attributes {dimension_semantics = [#tpu.dimension_semantics<parallel>], iteration_bounds = array<i64: 2>, scalar_prefetch = 0 : i64, scratch_operands = 1 : i64, tpu.core_type = #tpu.core_type<tc>, window_params = [{transform_indices = @transform_0, window_bounds = array<i64: 1, 8, 32>}, {pipeline_mode = #tpu.pipeline_mode<synchronous>, transform_indices = @transform_1, window_bounds = array<i64: 96, 32>}, {pipeline_mode = #tpu.pipeline_mode<synchronous>, transform_indices = @transform_2, window_bounds = array<i64: 32, 32>}, {pipeline_mode = #tpu.pipeline_mode<synchronous>, transform_indices = @transform_3, window_bounds = array<i64: 1, 32>}, {transform_indices = @transform_4, window_bounds = array<i64: 1, 8, 32>}]} {
    %c0 = arith.constant 0 : index
    %c0_0 = arith.constant 0 : index
    %c0_1 = arith.constant 0 : index
    %0 = vector.load %arg1[%c0, %c0_0, %c0_1] : memref<1x8x32xbf16, #tpu.memory_space<vmem>>, vector<1x8x32xbf16>
    %1 = vector.shape_cast %0 : vector<1x8x32xbf16> to vector<8x32xbf16>
    %c0_2 = arith.constant 0 : index
    %c0_3 = arith.constant 0 : index
    %2 = vector.load %arg2[%c0_2, %c0_3] : memref<96x32xbf16, #tpu.memory_space<vmem>>, vector<96x32xbf16>
    %cst = arith.constant dense<0.000000e+00> : vector<8x96xf32>
    %3 = tpu.matmul %1, %2, %cst {dimension_numbers = #tpu.dot_dimension_numbers<[1], [1], [0], [0], [0, 0, 1, 0], [], []>} : vector<8x32xbf16>, vector<96x32xbf16>, vector<8x96xf32> -> vector<8x96xf32>
    %4 = arith.truncf %3 : vector<8x96xf32> to vector<8x96xbf16>
    %5 = vector.extract_strided_slice %4 {offsets = [0, 0], sizes = [8, 4], strides = [1, 1]} : vector<8x96xbf16> to vector<8x4xbf16>
    %cst_4 = arith.constant 5.000000e-01 : bf16
    %6 = vector.broadcast %cst_4 : bf16 to vector<8x4xbf16>
    %7 = arith.mulf %5, %6 : vector<8x4xbf16>
    %8 = vector.extract_strided_slice %4 {offsets = [0, 32], sizes = [8, 4], strides = [1, 1]} : vector<8x96xbf16> to vector<8x4xbf16>
    %9 = vector.extract_strided_slice %4 {offsets = [0, 64], sizes = [8, 4], strides = [1, 1]} : vector<8x96xbf16> to vector<8x4xbf16>
    %cst_5 = arith.constant dense<0.000000e+00> : vector<8x8xf32>
    %10 = tpu.matmul %7, %8, %cst_5 {dimension_numbers = #tpu.dot_dimension_numbers<[1], [1], [0], [0], [0, 0, 1, 0], [], []>} : vector<8x4xbf16>, vector<8x4xbf16>, vector<8x8xf32> -> vector<8x8xf32>
    %cst_6 = arith.constant dense<0xFF800000> : vector<8xf32>
    %11 = vector.multi_reduction <maximumf>, %10, %cst_6 [1] : vector<8x8xf32> to vector<8xf32>
    %12 = vector.shape_cast %11 : vector<8xf32> to vector<8x1xf32>
    %13 = vector.broadcast %12 : vector<8x1xf32> to vector<8x8xf32>
    %14 = arith.subf %10, %13 : vector<8x8xf32>
    %15 = arith.truncf %14 : vector<8x8xf32> to vector<8x8xbf16>
    %16 = math.exp %15 : vector<8x8xbf16>
    %17 = arith.extf %16 : vector<8x8xbf16> to vector<8x8xf32>
    %cst_7 = arith.constant dense<0.000000e+00> : vector<8xf32>
    %18 = vector.multi_reduction <add>, %17, %cst_7 [1] : vector<8x8xf32> to vector<8xf32>
    %19 = vector.shape_cast %18 : vector<8xf32> to vector<8x1xf32>
    %cst_8 = arith.constant dense<0.000000e+00> : vector<8x4xf32>
    %20 = tpu.matmul %16, %9, %cst_8 {dimension_numbers = #tpu.dot_dimension_numbers<[1], [0], [0], [1], [0, 0, 1, 1], [], []>} : vector<8x8xbf16>, vector<8x4xbf16>, vector<8x4xf32> -> vector<8x4xf32>
    %21 = tpu.reciprocal %19 {approx = true} : vector<8x1xf32> -> vector<8x1xf32>
    %22 = vector.broadcast %21 : vector<8x1xf32> to vector<8x4xf32>
    %23 = arith.mulf %20, %22 : vector<8x4xf32>
    %24 = arith.truncf %23 : vector<8x4xf32> to vector<8x4xbf16>
    %c0_9 = arith.constant 0 : index
    %c0_10 = arith.constant 0 : index
    %25 = vector.load %arg6[%c0_9, %c0_10] : memref<8x32xbf16, #tpu.memory_space<vmem>>, vector<8x4xbf16>
    tpu.vector_store %arg6[%c0_9, %c0_10], %24 {strides = array<i32>} : memref<8x32xbf16, #tpu.memory_space<vmem>>, vector<8x4xbf16>,
    %26 = vector.extract_strided_slice %4 {offsets = [0, 4], sizes = [8, 4], strides = [1, 1]} : vector<8x96xbf16> to vector<8x4xbf16>
    %cst_11 = arith.constant 5.000000e-01 : bf16
    %27 = vector.broadcast %cst_11 : bf16 to vector<8x4xbf16>
    %28 = arith.mulf %26, %27 : vector<8x4xbf16>
    %29 = vector.extract_strided_slice %4 {offsets = [0, 36], sizes = [8, 4], strides = [1, 1]} : vector<8x96xbf16> to vector<8x4xbf16>
    %30 = vector.extract_strided_slice %4 {offsets = [0, 68], sizes = [8, 4], strides = [1, 1]} : vector<8x96xbf16> to vector<8x4xbf16>
    %cst_12 = arith.constant dense<0.000000e+00> : vector<8x8xf32>
    %31 = tpu.matmul %28, %29, %cst_12 {dimension_numbers = #tpu.dot_dimension_numbers<[1], [1], [0], [0], [0, 0, 1, 0], [], []>} : vector<8x4xbf16>, vector<8x4xbf16>, vector<8x8xf32> -> vector<8x8xf32>
    %cst_13 = arith.constant dense<0xFF800000> : vector<8xf32>
    %32 = vector.multi_reduction <maximumf>, %31, %cst_13 [1] : vector<8x8xf32> to vector<8xf32>
    %33 = vector.shape_cast %32 : vector<8xf32> to vector<8x1xf32>
    %34 = vector.broadcast %33 : vector<8x1xf32> to vector<8x8xf32>
    %35 = arith.subf %31, %34 : vector<8x8xf32>
    %36 = arith.truncf %35 : vector<8x8xf32> to vector<8x8xbf16>
    %37 = math.exp %36 : vector<8x8xbf16>
    %38 = arith.extf %37 : vector<8x8xbf16> to vector<8x8xf32>
    %cst_14 = arith.constant dense<0.000000e+00> : vector<8xf32>
    %39 = vector.multi_reduction <add>, %38, %cst_14 [1] : vector<8x8xf32> to vector<8xf32>
    %40 = vector.shape_cast %39 : vector<8xf32> to vector<8x1xf32>
    %cst_15 = arith.constant dense<0.000000e+00> : vector<8x4xf32>
    %41 = tpu.matmul %37, %30, %cst_15 {dimension_numbers = #tpu.dot_dimension_numbers<[1], [0], [0], [1], [0, 0, 1, 1], [], []>} : vector<8x8xbf16>, vector<8x4xbf16>, vector<8x4xf32> -> vector<8x4xf32>
    %42 = tpu.reciprocal %40 {approx = true} : vector<8x1xf32> -> vector<8x1xf32>
    %43 = vector.broadcast %42 : vector<8x1xf32> to vector<8x4xf32>
    %44 = arith.mulf %41, %43 : vector<8x4xf32>
    %45 = arith.truncf %44 : vector<8x4xf32> to vector<8x4xbf16>
    %c0_16 = arith.constant 0 : index
    %c4 = arith.constant 4 : index
    %46 = vector.load %arg6[%c0_16, %c4] : memref<8x32xbf16, #tpu.memory_space<vmem>>, vector<8x4xbf16>
    tpu.vector_store %arg6[%c0_16, %c4], %45 {strides = array<i32>} : memref<8x32xbf16, #tpu.memory_space<vmem>>, vector<8x4xbf16>,
    %47 = vector.extract_strided_slice %4 {offsets = [0, 8], sizes = [8, 4], strides = [1, 1]} : vector<8x96xbf16> to vector<8x4xbf16>
    %cst_17 = arith.constant 5.000000e-01 : bf16
    %48 = vector.broadcast %cst_17 : bf16 to vector<8x4xbf16>
    %49 = arith.mulf %47, %48 : vector<8x4xbf16>
    %50 = vector.extract_strided_slice %4 {offsets = [0, 40], sizes = [8, 4], strides = [1, 1]} : vector<8x96xbf16> to vector<8x4xbf16>
    %51 = vector.extract_strided_slice %4 {offsets = [0, 72], sizes = [8, 4], strides = [1, 1]} : vector<8x96xbf16> to vector<8x4xbf16>
    %cst_18 = arith.constant dense<0.000000e+00> : vector<8x8xf32>
    %52 = tpu.matmul %49, %50, %cst_18 {dimension_numbers = #tpu.dot_dimension_numbers<[1], [1], [0], [0], [0, 0, 1, 0], [], []>} : vector<8x4xbf16>, vector<8x4xbf16>, vector<8x8xf32> -> vector<8x8xf32>
    %cst_19 = arith.constant dense<0xFF800000> : vector<8xf32>
    %53 = vector.multi_reduction <maximumf>, %52, %cst_19 [1] : vector<8x8xf32> to vector<8xf32>
    %54 = vector.shape_cast %53 : vector<8xf32> to vector<8x1xf32>
    %55 = vector.broadcast %54 : vector<8x1xf32> to vector<8x8xf32>
    %56 = arith.subf %52, %55 : vector<8x8xf32>
    %57 = arith.truncf %56 : vector<8x8xf32> to vector<8x8xbf16>
    %58 = math.exp %57 : vector<8x8xbf16>
    %59 = arith.extf %58 : vector<8x8xbf16> to vector<8x8xf32>
    %cst_20 = arith.constant dense<0.000000e+00> : vector<8xf32>
    %60 = vector.multi_reduction <add>, %59, %cst_20 [1] : vector<8x8xf32> to vector<8xf32>
    %61 = vector.shape_cast %60 : vector<8xf32> to vector<8x1xf32>
    %cst_21 = arith.constant dense<0.000000e+00> : vector<8x4xf32>
    %62 = tpu.matmul %58, %51, %cst_21 {dimension_numbers = #tpu.dot_dimension_numbers<[1], [0], [0], [1], [0, 0, 1, 1], [], []>} : vector<8x8xbf16>, vector<8x4xbf16>, vector<8x4xf32> -> vector<8x4xf32>
    %63 = tpu.reciprocal %61 {approx = true} : vector<8x1xf32> -> vector<8x1xf32>
    %64 = vector.broadcast %63 : vector<8x1xf32> to vector<8x4xf32>
    %65 = arith.mulf %62, %64 : vector<8x4xf32>
    %66 = arith.truncf %65 : vector<8x4xf32> to vector<8x4xbf16>
    %c0_22 = arith.constant 0 : index
    %c8 = arith.constant 8 : index
    %67 = vector.load %arg6[%c0_22, %c8] : memref<8x32xbf16, #tpu.memory_space<vmem>>, vector<8x4xbf16>
    tpu.vector_store %arg6[%c0_22, %c8], %66 {strides = array<i32>} : memref<8x32xbf16, #tpu.memory_space<vmem>>, vector<8x4xbf16>,
    %68 = vector.extract_strided_slice %4 {offsets = [0, 12], sizes = [8, 4], strides = [1, 1]} : vector<8x96xbf16> to vector<8x4xbf16>
    %cst_23 = arith.constant 5.000000e-01 : bf16
    %69 = vector.broadcast %cst_23 : bf16 to vector<8x4xbf16>
    %70 = arith.mulf %68, %69 : vector<8x4xbf16>
    %71 = vector.extract_strided_slice %4 {offsets = [0, 44], sizes = [8, 4], strides = [1, 1]} : vector<8x96xbf16> to vector<8x4xbf16>
    %72 = vector.extract_strided_slice %4 {offsets = [0, 76], sizes = [8, 4], strides = [1, 1]} : vector<8x96xbf16> to vector<8x4xbf16>
    %cst_24 = arith.constant dense<0.000000e+00> : vector<8x8xf32>
    %73 = tpu.matmul %70, %71, %cst_24 {dimension_numbers = #tpu.dot_dimension_numbers<[1], [1], [0], [0], [0, 0, 1, 0], [], []>} : vector<8x4xbf16>, vector<8x4xbf16>, vector<8x8xf32> -> vector<8x8xf32>
    %cst_25 = arith.constant dense<0xFF800000> : vector<8xf32>
    %74 = vector.multi_reduction <maximumf>, %73, %cst_25 [1] : vector<8x8xf32> to vector<8xf32>
    %75 = vector.shape_cast %74 : vector<8xf32> to vector<8x1xf32>
    %76 = vector.broadcast %75 : vector<8x1xf32> to vector<8x8xf32>
    %77 = arith.subf %73, %76 : vector<8x8xf32>
    %78 = arith.truncf %77 : vector<8x8xf32> to vector<8x8xbf16>
    %79 = math.exp %78 : vector<8x8xbf16>
    %80 = arith.extf %79 : vector<8x8xbf16> to vector<8x8xf32>
    %cst_26 = arith.constant dense<0.000000e+00> : vector<8xf32>
    %81 = vector.multi_reduction <add>, %80, %cst_26 [1] : vector<8x8xf32> to vector<8xf32>
    %82 = vector.shape_cast %81 : vector<8xf32> to vector<8x1xf32>
    %cst_27 = arith.constant dense<0.000000e+00> : vector<8x4xf32>
    %83 = tpu.matmul %79, %72, %cst_27 {dimension_numbers = #tpu.dot_dimension_numbers<[1], [0], [0], [1], [0, 0, 1, 1], [], []>} : vector<8x8xbf16>, vector<8x4xbf16>, vector<8x4xf32> -> vector<8x4xf32>
    %84 = tpu.reciprocal %82 {approx = true} : vector<8x1xf32> -> vector<8x1xf32>
    %85 = vector.broadcast %84 : vector<8x1xf32> to vector<8x4xf32>
    %86 = arith.mulf %83, %85 : vector<8x4xf32>
    %87 = arith.truncf %86 : vector<8x4xf32> to vector<8x4xbf16>
    %c0_28 = arith.constant 0 : index
    %c12 = arith.constant 12 : index
    %88 = vector.load %arg6[%c0_28, %c12] : memref<8x32xbf16, #tpu.memory_space<vmem>>, vector<8x4xbf16>
    tpu.vector_store %arg6[%c0_28, %c12], %87 {strides = array<i32>} : memref<8x32xbf16, #tpu.memory_space<vmem>>, vector<8x4xbf16>,
    %89 = vector.extract_strided_slice %4 {offsets = [0, 16], sizes = [8, 4], strides = [1, 1]} : vector<8x96xbf16> to vector<8x4xbf16>
    %cst_29 = arith.constant 5.000000e-01 : bf16
    %90 = vector.broadcast %cst_29 : bf16 to vector<8x4xbf16>
    %91 = arith.mulf %89, %90 : vector<8x4xbf16>
    %92 = vector.extract_strided_slice %4 {offsets = [0, 48], sizes = [8, 4], strides = [1, 1]} : vector<8x96xbf16> to vector<8x4xbf16>
    %93 = vector.extract_strided_slice %4 {offsets = [0, 80], sizes = [8, 4], strides = [1, 1]} : vector<8x96xbf16> to vector<8x4xbf16>
    %cst_30 = arith.constant dense<0.000000e+00> : vector<8x8xf32>
    %94 = tpu.matmul %91, %92, %cst_30 {dimension_numbers = #tpu.dot_dimension_numbers<[1], [1], [0], [0], [0, 0, 1, 0], [], []>} : vector<8x4xbf16>, vector<8x4xbf16>, vector<8x8xf32> -> vector<8x8xf32>
    %cst_31 = arith.constant dense<0xFF800000> : vector<8xf32>
    %95 = vector.multi_reduction <maximumf>, %94, %cst_31 [1] : vector<8x8xf32> to vector<8xf32>
    %96 = vector.shape_cast %95 : vector<8xf32> to vector<8x1xf32>
    %97 = vector.broadcast %96 : vector<8x1xf32> to vector<8x8xf32>
    %98 = arith.subf %94, %97 : vector<8x8xf32>
    %99 = arith.truncf %98 : vector<8x8xf32> to vector<8x8xbf16>
    %100 = math.exp %99 : vector<8x8xbf16>
    %101 = arith.extf %100 : vector<8x8xbf16> to vector<8x8xf32>
    %cst_32 = arith.constant dense<0.000000e+00> : vector<8xf32>
    %102 = vector.multi_reduction <add>, %101, %cst_32 [1] : vector<8x8xf32> to vector<8xf32>
    %103 = vector.shape_cast %102 : vector<8xf32> to vector<8x1xf32>
    %cst_33 = arith.constant dense<0.000000e+00> : vector<8x4xf32>
    %104 = tpu.matmul %100, %93, %cst_33 {dimension_numbers = #tpu.dot_dimension_numbers<[1], [0], [0], [1], [0, 0, 1, 1], [], []>} : vector<8x8xbf16>, vector<8x4xbf16>, vector<8x4xf32> -> vector<8x4xf32>
    %105 = tpu.reciprocal %103 {approx = true} : vector<8x1xf32> -> vector<8x1xf32>
    %106 = vector.broadcast %105 : vector<8x1xf32> to vector<8x4xf32>
    %107 = arith.mulf %104, %106 : vector<8x4xf32>
    %108 = arith.truncf %107 : vector<8x4xf32> to vector<8x4xbf16>
    %c0_34 = arith.constant 0 : index
    %c16 = arith.constant 16 : index
    %109 = vector.load %arg6[%c0_34, %c16] : memref<8x32xbf16, #tpu.memory_space<vmem>>, vector<8x4xbf16>
    tpu.vector_store %arg6[%c0_34, %c16], %108 {strides = array<i32>} : memref<8x32xbf16, #tpu.memory_space<vmem>>, vector<8x4xbf16>,
    %110 = vector.extract_strided_slice %4 {offsets = [0, 20], sizes = [8, 4], strides = [1, 1]} : vector<8x96xbf16> to vector<8x4xbf16>
    %cst_35 = arith.constant 5.000000e-01 : bf16
    %111 = vector.broadcast %cst_35 : bf16 to vector<8x4xbf16>
    %112 = arith.mulf %110, %111 : vector<8x4xbf16>
    %113 = vector.extract_strided_slice %4 {offsets = [0, 52], sizes = [8, 4], strides = [1, 1]} : vector<8x96xbf16> to vector<8x4xbf16>
    %114 = vector.extract_strided_slice %4 {offsets = [0, 84], sizes = [8, 4], strides = [1, 1]} : vector<8x96xbf16> to vector<8x4xbf16>
    %cst_36 = arith.constant dense<0.000000e+00> : vector<8x8xf32>
    %115 = tpu.matmul %112, %113, %cst_36 {dimension_numbers = #tpu.dot_dimension_numbers<[1], [1], [0], [0], [0, 0, 1, 0], [], []>} : vector<8x4xbf16>, vector<8x4xbf16>, vector<8x8xf32> -> vector<8x8xf32>
    %cst_37 = arith.constant dense<0xFF800000> : vector<8xf32>
    %116 = vector.multi_reduction <maximumf>, %115, %cst_37 [1] : vector<8x8xf32> to vector<8xf32>
    %117 = vector.shape_cast %116 : vector<8xf32> to vector<8x1xf32>
    %118 = vector.broadcast %117 : vector<8x1xf32> to vector<8x8xf32>
    %119 = arith.subf %115, %118 : vector<8x8xf32>
    %120 = arith.truncf %119 : vector<8x8xf32> to vector<8x8xbf16>
    %121 = math.exp %120 : vector<8x8xbf16>
    %122 = arith.extf %121 : vector<8x8xbf16> to vector<8x8xf32>
    %cst_38 = arith.constant dense<0.000000e+00> : vector<8xf32>
    %123 = vector.multi_reduction <add>, %122, %cst_38 [1] : vector<8x8xf32> to vector<8xf32>
    %124 = vector.shape_cast %123 : vector<8xf32> to vector<8x1xf32>
    %cst_39 = arith.constant dense<0.000000e+00> : vector<8x4xf32>
    %125 = tpu.matmul %121, %114, %cst_39 {dimension_numbers = #tpu.dot_dimension_numbers<[1], [0], [0], [1], [0, 0, 1, 1], [], []>} : vector<8x8xbf16>, vector<8x4xbf16>, vector<8x4xf32> -> vector<8x4xf32>
    %126 = tpu.reciprocal %124 {approx = true} : vector<8x1xf32> -> vector<8x1xf32>
    %127 = vector.broadcast %126 : vector<8x1xf32> to vector<8x4xf32>
    %128 = arith.mulf %125, %127 : vector<8x4xf32>
    %129 = arith.truncf %128 : vector<8x4xf32> to vector<8x4xbf16>
    %c0_40 = arith.constant 0 : index
    %c20 = arith.constant 20 : index
    %130 = vector.load %arg6[%c0_40, %c20] : memref<8x32xbf16, #tpu.memory_space<vmem>>, vector<8x4xbf16>
    tpu.vector_store %arg6[%c0_40, %c20], %129 {strides = array<i32>} : memref<8x32xbf16, #tpu.memory_space<vmem>>, vector<8x4xbf16>,
    %131 = vector.extract_strided_slice %4 {offsets = [0, 24], sizes = [8, 4], strides = [1, 1]} : vector<8x96xbf16> to vector<8x4xbf16>
    %cst_41 = arith.constant 5.000000e-01 : bf16
    %132 = vector.broadcast %cst_41 : bf16 to vector<8x4xbf16>
    %133 = arith.mulf %131, %132 : vector<8x4xbf16>
    %134 = vector.extract_strided_slice %4 {offsets = [0, 56], sizes = [8, 4], strides = [1, 1]} : vector<8x96xbf16> to vector<8x4xbf16>
    %135 = vector.extract_strided_slice %4 {offsets = [0, 88], sizes = [8, 4], strides = [1, 1]} : vector<8x96xbf16> to vector<8x4xbf16>
    %cst_42 = arith.constant dense<0.000000e+00> : vector<8x8xf32>
    %136 = tpu.matmul %133, %134, %cst_42 {dimension_numbers = #tpu.dot_dimension_numbers<[1], [1], [0], [0], [0, 0, 1, 0], [], []>} : vector<8x4xbf16>, vector<8x4xbf16>, vector<8x8xf32> -> vector<8x8xf32>
    %cst_43 = arith.constant dense<0xFF800000> : vector<8xf32>
    %137 = vector.multi_reduction <maximumf>, %136, %cst_43 [1] : vector<8x8xf32> to vector<8xf32>
    %138 = vector.shape_cast %137 : vector<8xf32> to vector<8x1xf32>
    %139 = vector.broadcast %138 : vector<8x1xf32> to vector<8x8xf32>
    %140 = arith.subf %136, %139 : vector<8x8xf32>
    %141 = arith.truncf %140 : vector<8x8xf32> to vector<8x8xbf16>
    %142 = math.exp %141 : vector<8x8xbf16>
    %143 = arith.extf %142 : vector<8x8xbf16> to vector<8x8xf32>
    %cst_44 = arith.constant dense<0.000000e+00> : vector<8xf32>
    %144 = vector.multi_reduction <add>, %143, %cst_44 [1] : vector<8x8xf32> to vector<8xf32>
    %145 = vector.shape_cast %144 : vector<8xf32> to vector<8x1xf32>
    %cst_45 = arith.constant dense<0.000000e+00> : vector<8x4xf32>
    %146 = tpu.matmul %142, %135, %cst_45 {dimension_numbers = #tpu.dot_dimension_numbers<[1], [0], [0], [1], [0, 0, 1, 1], [], []>} : vector<8x8xbf16>, vector<8x4xbf16>, vector<8x4xf32> -> vector<8x4xf32>
    %147 = tpu.reciprocal %145 {approx = true} : vector<8x1xf32> -> vector<8x1xf32>
    %148 = vector.broadcast %147 : vector<8x1xf32> to vector<8x4xf32>
    %149 = arith.mulf %146, %148 : vector<8x4xf32>
    %150 = arith.truncf %149 : vector<8x4xf32> to vector<8x4xbf16>
    %c0_46 = arith.constant 0 : index
    %c24 = arith.constant 24 : index
    %151 = vector.load %arg6[%c0_46, %c24] : memref<8x32xbf16, #tpu.memory_space<vmem>>, vector<8x4xbf16>
    tpu.vector_store %arg6[%c0_46, %c24], %150 {strides = array<i32>} : memref<8x32xbf16, #tpu.memory_space<vmem>>, vector<8x4xbf16>,
    %152 = vector.extract_strided_slice %4 {offsets = [0, 28], sizes = [8, 4], strides = [1, 1]} : vector<8x96xbf16> to vector<8x4xbf16>
    %cst_47 = arith.constant 5.000000e-01 : bf16
    %153 = vector.broadcast %cst_47 : bf16 to vector<8x4xbf16>
    %154 = arith.mulf %152, %153 : vector<8x4xbf16>
    %155 = vector.extract_strided_slice %4 {offsets = [0, 60], sizes = [8, 4], strides = [1, 1]} : vector<8x96xbf16> to vector<8x4xbf16>
    %156 = vector.extract_strided_slice %4 {offsets = [0, 92], sizes = [8, 4], strides = [1, 1]} : vector<8x96xbf16> to vector<8x4xbf16>
    %cst_48 = arith.constant dense<0.000000e+00> : vector<8x8xf32>
    %157 = tpu.matmul %154, %155, %cst_48 {dimension_numbers = #tpu.dot_dimension_numbers<[1], [1], [0], [0], [0, 0, 1, 0], [], []>} : vector<8x4xbf16>, vector<8x4xbf16>, vector<8x8xf32> -> vector<8x8xf32>
    %cst_49 = arith.constant dense<0xFF800000> : vector<8xf32>
    %158 = vector.multi_reduction <maximumf>, %157, %cst_49 [1] : vector<8x8xf32> to vector<8xf32>
    %159 = vector.shape_cast %158 : vector<8xf32> to vector<8x1xf32>
    %160 = vector.broadcast %159 : vector<8x1xf32> to vector<8x8xf32>
    %161 = arith.subf %157, %160 : vector<8x8xf32>
    %162 = arith.truncf %161 : vector<8x8xf32> to vector<8x8xbf16>
    %163 = math.exp %162 : vector<8x8xbf16>
    %164 = arith.extf %163 : vector<8x8xbf16> to vector<8x8xf32>
    %cst_50 = arith.constant dense<0.000000e+00> : vector<8xf32>
    %165 = vector.multi_reduction <add>, %164, %cst_50 [1] : vector<8x8xf32> to vector<8xf32>
    %166 = vector.shape_cast %165 : vector<8xf32> to vector<8x1xf32>
    %cst_51 = arith.constant dense<0.000000e+00> : vector<8x4xf32>
    %167 = tpu.matmul %163, %156, %cst_51 {dimension_numbers = #tpu.dot_dimension_numbers<[1], [0], [0], [1], [0, 0, 1, 1], [], []>} : vector<8x8xbf16>, vector<8x4xbf16>, vector<8x4xf32> -> vector<8x4xf32>
    %168 = tpu.reciprocal %166 {approx = true} : vector<8x1xf32> -> vector<8x1xf32>
    %169 = vector.broadcast %168 : vector<8x1xf32> to vector<8x4xf32>
    %170 = arith.mulf %167, %169 : vector<8x4xf32>
    %171 = arith.truncf %170 : vector<8x4xf32> to vector<8x4xbf16>
    %c0_52 = arith.constant 0 : index
    %c28 = arith.constant 28 : index
    %172 = vector.load %arg6[%c0_52, %c28] : memref<8x32xbf16, #tpu.memory_space<vmem>>, vector<8x4xbf16>
    tpu.vector_store %arg6[%c0_52, %c28], %171 {strides = array<i32>} : memref<8x32xbf16, #tpu.memory_space<vmem>>, vector<8x4xbf16>,
    %c0_53 = arith.constant 0 : index
    %c0_54 = arith.constant 0 : index
    %173 = vector.load %arg6[%c0_53, %c0_54] : memref<8x32xbf16, #tpu.memory_space<vmem>>, vector<8x32xbf16>
    %c0_55 = arith.constant 0 : index
    %c0_56 = arith.constant 0 : index
    %174 = vector.load %arg3[%c0_55, %c0_56] : memref<32x32xbf16, #tpu.memory_space<vmem>>, vector<32x32xbf16>
    %cst_57 = arith.constant dense<0.000000e+00> : vector<8x32xf32>
    %175 = tpu.matmul %173, %174, %cst_57 {dimension_numbers = #tpu.dot_dimension_numbers<[1], [1], [0], [0], [0, 0, 1, 0], [], []>} : vector<8x32xbf16>, vector<32x32xbf16>, vector<8x32xf32> -> vector<8x32xf32>
    %c0_58 = arith.constant 0 : index
    %c0_59 = arith.constant 0 : index
    %176 = vector.load %arg4[%c0_58, %c0_59] : memref<1x32xbf16, #tpu.memory_space<vmem>>, vector<1x32xbf16>
    %177 = arith.extf %176 : vector<1x32xbf16> to vector<1x32xf32>
    %178 = vector.broadcast %177 : vector<1x32xf32> to vector<8x32xf32>
    %179 = arith.addf %175, %178 : vector<8x32xf32>
    %c0_60 = arith.constant 0 : index
    %c0_61 = arith.constant 0 : index
    %c0_62 = arith.constant 0 : index
    %180 = vector.load %arg5[%c0_60, %c0_61, %c0_62] : memref<1x8x32xf32, #tpu.memory_space<vmem>>, vector<1x8x32xf32>
    %181 = vector.shape_cast %180 : vector<1x8x32xf32> to vector<8x32xf32>
    %182 = vector.shape_cast %179 : vector<8x32xf32> to vector<1x8x32xf32>
    tpu.vector_store %arg5[%c0_60, %c0_61, %c0_62], %182 {strides = array<i32>} : memref<1x8x32xf32, #tpu.memory_space<vmem>>, vector<1x8x32xf32>,
    return
  }
  func.func @transform_0(%arg0: i32) -> (i32, i32, i32) {
    %c0_i32 = arith.constant 0 : i32
    %c0_i32_0 = arith.constant 0 : i32
    %c0_i32_1 = arith.constant 0 : i32
    return %arg0, %c0_i32, %c0_i32_0 : i32, i32, i32
  }
  func.func @transform_1(%arg0: i32) -> (i32, i32) {
    %c0_i32 = arith.constant 0 : i32
    %c0_i32_0 = arith.constant 0 : i32
    %c0_i32_1 = arith.constant 0 : i32
    return %c0_i32, %c0_i32_0 : i32, i32
  }
  func.func @transform_2(%arg0: i32) -> (i32, i32) {
    %c0_i32 = arith.constant 0 : i32
    %c0_i32_0 = arith.constant 0 : i32
    %c0_i32_1 = arith.constant 0 : i32
    return %c0_i32, %c0_i32_0 : i32, i32
  }
  func.func @transform_3(%arg0: i32) -> (i32, i32) {
    %c0_i32 = arith.constant 0 : i32
    %c0_i32_0 = arith.constant 0 : i32
    %c0_i32_1 = arith.constant 0 : i32
    return %c0_i32, %c0_i32_0 : i32, i32
  }
  func.func @transform_4(%arg0: i32) -> (i32, i32, i32) {
    %c0_i32 = arith.constant 0 : i32
    %c0_i32_0 = arith.constant 0 : i32
    %c0_i32_1 = arith.constant 0 : i32
    return %arg0, %c0_i32, %c0_i32_0 : i32, i32, i32
  }
}

</mosaic_0001>

<llo_original>
// kernel: tpu_custom_call.1
$region0: #{tpu_custom_call.1}
  #allocation0 [shape = 'u32[]', space=smem, size = 0x4, offset = 0x4, fixed_abs, tag = 'smem constant byte address 0x4 - core index']
  #allocation1 [shape = 'u32[144,128]{1,0:T(1,128)}', space=vmem, size = 0x12000, scoped, tag = 'internal scratch']
  #allocation2 [shape = 'bf16[8,32]{1,0:T(8,128)(2,1)}', space=vmem, size = 0x800, scoped, tag = 'scratch operand']
  %s0 = inlined_call_operand.vmem [shape: bf16[2,8,32], index: 0, kind: input, shape index: {}]
  %s1 = inlined_call_operand.vmem [shape: bf16[96,32], index: 1, kind: input, shape index: {}]
  %s2 = inlined_call_operand.vmem [shape: bf16[32,32], index: 2, kind: input, shape index: {}]
  %s3 = inlined_call_operand.vmem [shape: bf16[1,32], index: 3, kind: input, shape index: {}]
  %s4 = inlined_call_operand.hbm [shape: f32[2,8,32], index: 4, kind: output, shape index: {}]
  %s5 = sld [smem:[#allocation0]]
  $region49: #{tpu_custom_call.1} parent=0
    _
  %s7 = ssub.s32 1, %s5
  %s8 = scalar_select 0, %s7, %s5
  $region1: #{tpu_custom_call.1} parent=0
    #allocation3 [shape = 'u8[8192]{0}', space=vmem, size = 0x2000, scoped, tag = 'output window, operand 0']
    #allocation4 [shape = 's32[2]{0}', space=sflag, size = 0x8, scoped, tag = 'scoped memory for tpu_custom_call.1']
    %9 = vsyncpa [#allocation4], 0
    %s10 = scalar_lea.sflag [#allocation4], 1
    %11 = vsyncpa %s10, 0
    loop: start=0, step=1, limit=4
    $region2: #{tpu_custom_call.1} parent=1 // loop_pre_header
      _
    $region3: #{tpu_custom_call.1} parent=1 // loop_header
      %s13 = sphi 0, %s17
      %p14 = scmp.ge.s32.totalorder %s13, 4
      %s23 = sphi 0, %s25
      %s26 = sphi 0, %s23
      %s27 = sphi 0, %s26
      %s43 = sphi 0, %s27
      %s47 = sphi 0, %s47
      %s49 = sphi 0, %s47
      %s50 = sphi 0, %s49
      %s64 = sphi 0, %s50
      %s68 = sphi 0, %s68
      %s70 = sphi 0, %s68
      %s71 = sphi 0, %s70
      %s85 = sphi 0, %s71
      %s89 = sphi 0, %s89
      %s91 = sphi 0, %s89
      %s92 = sphi 0, %s91
      %s106 = sphi 0, %s92
      %s112 = sphi 0, %s114
      %s115 = sphi 0, %s112
      %s116 = sphi 0, %s115
      %s132 = sphi 0, %s116
    $region4: #{tpu_custom_call.1} parent=1 // loop_header_branch
      %16 = sbr.rel (%p14) target = $region8
    $region5: #{tpu_custom_call.1} parent=1 // loop_body
      %s18 = ssub.s32 %s13, 1
      %s19 = ssub.s32 %s13, 2
      %s20 = sadd.s32 %s13, 1
      %s21 = ssub.s32 %s13, %s20
      %p22 = scmp.eq.s32.totalorder %s21, 0
      %s24 = sadd.s32 %s23, 1
      %s25 = scalar_select %p22, %s23, %s24
      %p28 = pneg %p22
      %p29 = scmp.eq.s32.totalorder %s13, 1
      %p30 = por %p28, %p29
      %p31 = scmp.ne.s32.totalorder %s23, %s26
      %p32 = scmp.eq.s32.totalorder %s13, 0
      %p33 = por %p31, %p32
      %p34 = scmp.ne.s32.totalorder %s23, %s26
      %p35 = scmp.eq.s32.totalorder %s18, 1
      %p36 = por %p34, %p35
      %p37 = scmp.ne.s32.totalorder %s26, %s27
      %p38 = scmp.eq.s32.totalorder %s18, 0
      %p39 = por %p37, %p38
      %p40 = scmp.ne.s32.totalorder %s26, %s27
      %p41 = scmp.eq.s32.totalorder %s19, 1
      %p42 = por %p40, %p41
      %p44 = scmp.ne.s32.totalorder %s27, %s43
      %p45 = scmp.eq.s32.totalorder %s19, 0
      %p46 = por %p44, %p45
      %s48 = sadd.s32 %s47, 1
      %p51 = scmp.eq.s32.totalorder %s13, 1
      %p52 = scmp.ne.s32.totalorder %s47, %s49
      %p53 = scmp.eq.s32.totalorder %s13, 0
      %p54 = por %p52, %p53
      %p55 = scmp.ne.s32.totalorder %s47, %s49
      %p56 = scmp.eq.s32.totalorder %s18, 1
      %p57 = por %p55, %p56
      %p58 = scmp.ne.s32.totalorder %s49, %s50
      %p59 = scmp.eq.s32.totalorder %s18, 0
      %p60 = por %p58, %p59
      %p61 = scmp.ne.s32.totalorder %s49, %s50
      %p62 = scmp.eq.s32.totalorder %s19, 1
      %p63 = por %p61, %p62
      %p65 = scmp.ne.s32.totalorder %s50, %s64
      %p66 = scmp.eq.s32.totalorder %s19, 0
      %p67 = por %p65, %p66
      %s69 = sadd.s32 %s68, 1
      %p72 = scmp.eq.s32.totalorder %s13, 1
      %p73 = scmp.ne.s32.totalorder %s68, %s70
      %p74 = scmp.eq.s32.totalorder %s13, 0
      %p75 = por %p73, %p74
      %p76 = scmp.ne.s32.totalorder %s68, %s70
      %p77 = scmp.eq.s32.totalorder %s18, 1
      %p78 = por %p76, %p77
      %p79 = scmp.ne.s32.totalorder %s70, %s71
      %p80 = scmp.eq.s32.totalorder %s18, 0
      %p81 = por %p79, %p80
      %p82 = scmp.ne.s32.totalorder %s70, %s71
      %p83 = scmp.eq.s32.totalorder %s19, 1
      %p84 = por %p82, %p83
      %p86 = scmp.ne.s32.totalorder %s71, %s85
      %p87 = scmp.eq.s32.totalorder %s19, 0
      %p88 = por %p86, %p87
      %s90 = sadd.s32 %s89, 1
      %p93 = scmp.eq.s32.totalorder %s13, 1
      %p94 = scmp.ne.s32.totalorder %s89, %s91
      %p95 = scmp.eq.s32.totalorder %s13, 0
      %p96 = por %p94, %p95
      %p97 = scmp.ne.s32.totalorder %s89, %s91
      %p98 = scmp.eq.s32.totalorder %s18, 1
      %p99 = por %p97, %p98
      %p100 = scmp.ne.s32.totalorder %s91, %s92
      %p101 = scmp.eq.s32.totalorder %s18, 0
      %p102 = por %p100, %p101
      %p103 = scmp.ne.s32.totalorder %s91, %s92
      %p104 = scmp.eq.s32.totalorder %s19, 1
      %p105 = por %p103, %p104
      %p107 = scmp.ne.s32.totalorder %s92, %s106
      %p108 = scmp.eq.s32.totalorder %s19, 0
      %p109 = por %p107, %p108
      %s110 = ssub.s32 %s13, %s20
      %p111 = scmp.eq.s32.totalorder %s110, 0
      %s113 = sadd.s32 %s112, 1
      %s114 = scalar_select %p111, %s112, %s113
      %p117 = pneg %p111
      %p118 = scmp.eq.s32.totalorder %s13, 1
      %p119 = por %p117, %p118
      %p120 = scmp.ne.s32.totalorder %s112, %s115
      %p121 = scmp.eq.s32.totalorder %s13, 0
      %p122 = por %p120, %p121
      %p123 = scmp.ne.s32.totalorder %s112, %s115
      %p124 = scmp.eq.s32.totalorder %s18, 1
      %p125 = por %p123, %p124
      %p126 = scmp.ne.s32.totalorder %s115, %s116
      %p127 = scmp.eq.s32.totalorder %s18, 0
      %p128 = por %p126, %p127
      %p129 = scmp.ne.s32.totalorder %s115, %s116
      %p130 = scmp.eq.s32.totalorder %s19, 1
      %p131 = por %p129, %p130
      %p133 = scmp.ne.s32.totalorder %s116, %s132
      %p134 = scmp.eq.s32.totalorder %s19, 0
      %p135 = por %p133, %p134
      %p136 = scmp.le.s32.totalorder 1, %s13
      %p137 = scmp.lt.s32.totalorder %s13, 3
      %p138 = pnand %p136, %p137
      %p139 = pneg %p138
      // Predicated region
      $region9: #{tpu_custom_call.1} parent=5 // pred_check
        _
      $region10: #{tpu_custom_call.1} parent=5 // pred_check_branch
        %141 = sbr.rel (%p138) target = $region12
      $region11: #{tpu_custom_call.1} parent=5 // pred_region
        %s142 = ssub.s32 %s13, 1
        // Predicated region
        $region13: #{tpu_custom_call.1} parent=11 // pred_check
          %p143 = pneg %p60
        $region14: #{tpu_custom_call.1} parent=11 // pred_check_branch
          %145 = sbr.rel (%p143) target = $region16
        $region15: #{tpu_custom_call.1} parent=11 // pred_region
          _
        $region16: #{tpu_custom_call.1} parent=11 // pred_fallthru
          _
        // Predicated region
        $region17: #{tpu_custom_call.1} parent=11 // pred_check
          %p146 = pneg %p81
        $region18: #{tpu_custom_call.1} parent=11 // pred_check_branch
          %148 = sbr.rel (%p146) target = $region20
        $region19: #{tpu_custom_call.1} parent=11 // pred_region
          _
        $region20: #{tpu_custom_call.1} parent=11 // pred_fallthru
          _
        // Predicated region
        $region21: #{tpu_custom_call.1} parent=11 // pred_check
          %p149 = pneg %p102
        $region22: #{tpu_custom_call.1} parent=11 // pred_check_branch
          %151 = sbr.rel (%p149) target = $region24
        $region23: #{tpu_custom_call.1} parent=11 // pred_region
          _
        $region24: #{tpu_custom_call.1} parent=11 // pred_fallthru
          _
      $region12: #{tpu_custom_call.1} parent=5 // pred_fallthru
        _
      %p152 = scmp.lt.s32.totalorder %s13, 2
      // Predicated region
      $region25: #{tpu_custom_call.1} parent=5 // pred_check
        %p153 = pneg %p152
      $region26: #{tpu_custom_call.1} parent=5 // pred_check_branch
        %155 = sbr.rel (%p153) target = $region28
      $region27: #{tpu_custom_call.1} parent=5 // pred_region
        // Predicated region
        $region29: #{tpu_custom_call.1} parent=27 // pred_check
          %p156 = pneg %p33
        $region30: #{tpu_custom_call.1} parent=27 // pred_check_branch
          %158 = sbr.rel (%p156) target = $region32
        $region31: #{tpu_custom_call.1} parent=27 // pred_region
          %p159 = scmp.lt.s32.totalorder %s13, 1
          %s160 = scalar_select %p159, %s13, 1
          %s161 = smul.addr %s160, 4
          %s162 = scalar_lea.vmem %s0, %s161
        $region32: #{tpu_custom_call.1} parent=27 // pred_fallthru
          _
      $region28: #{tpu_custom_call.1} parent=5 // pred_fallthru
        _
      %p163 = scmp.le.s32.totalorder 1, %s13
      %p164 = scmp.lt.s32.totalorder %s13, 3
      %p165 = pnand %p163, %p164
      %p166 = pneg %p165
      // Predicated region
      $region33: #{tpu_custom_call.1} parent=5 // pred_check
        _
      $region34: #{tpu_custom_call.1} parent=5 // pred_check_branch
        %168 = sbr.rel (%p165) target = $region36
      $region35: #{tpu_custom_call.1} parent=5 // pred_region
        %s169 = ssub.s32 %s13, 1
        %p170 = scmp.lt.s32.totalorder %s18, 1
        %s171 = scalar_select %p170, %s18, 1
        %s172 = smul.addr %s171, 4
        %s173 = scalar_lea.vmem %s0, %s172
        %p174 = pneg %p39
        %p175 = pneg %p36
        %p176 = pneg %p60
        %p177 = pneg %p57
        %p178 = pneg %p81
        %p179 = pneg %p78
        %p180 = pneg %p102
        %p181 = pneg %p99
        %p182 = pneg %p128
        %p183 = pneg %p125
        %s184 = sand.u32 %s115, 1
        %s185 = scalar_lea.sflag [#allocation4], %s184
        %s186 = sand.u32 %s115, 1
        %s187 = smul.addr %s186, 8
        %s188 = scalar_lea.vmem [#allocation3], %s187
        %p189 = scmp.lt.s32.totalorder %s18, 1
        %s190 = scalar_select %p189, %s18, 1
        %s191 = smul.addr %s190, 4
        %s192 = scalar_lea.vmem %s0, %s191
        %v195 = vld [vmem:[%s192] sm:$0xf]
        %v196 = vld [vmem:[%s1] sm:$0xf]
        %v197 = vld [vmem:[%s1 + $0x4] sm:$0xf]
        %v198 = vld [vmem:[%s1 + $0x8] sm:$0xf]
        %v199 = vld [vmem:[%s1 + $0xc] sm:$0xf]
        %v200 = vld [vmem:[%s1 + $0x10] sm:$0xf]
        %v201 = vld [vmem:[%s1 + $0x14] sm:$0xf]
        %v202 = vld [vmem:[%s1 + $0x18] sm:$0xf]
        %v203 = vld [vmem:[%s1 + $0x1c] sm:$0xf]
        %v204 = vld [vmem:[%s1 + $0x20] sm:$0xf]
        %v205 = vld [vmem:[%s1 + $0x24] sm:$0xf]
        %v206 = vld [vmem:[%s1 + $0x28] sm:$0xf]
        %v207 = vld [vmem:[%s1 + $0x2c] sm:$0xf]
        %v220 = vunpack.c.l.b16 %v196
        %v221 = vunpack.c.l.b16 %v197
        %v222 = vunpack.c.l.b16 %v198
        %v223 = vunpack.c.l.b16 %v199
        %v224 = vunpack.c.l.b16 %v200
        %v225 = vunpack.c.l.b16 %v201
        %v226 = vunpack.c.l.b16 %v202
        %v227 = vunpack.c.l.b16 %v203
        %v228 = vunpack.c.l.b16 %v204
        %v229 = vunpack.c.l.b16 %v205
        %v230 = vunpack.c.l.b16 %v206
        %v231 = vunpack.c.l.b16 %v207
        %v232 = vpack.c.b16 %v221, %v220
        %v233 = vpack.c.b16 %v223, %v222
        %v234 = vpack.c.b16 %v225, %v224
        %v235 = vpack.c.b16 %v227, %v226
        %v236 = vpack.c.b16 %v229, %v228
        %v237 = vpack.c.b16 %v231, %v230
        %vm238 = vcmask 261120
        %v240 = vsel %vm238, %v195, 0
        %v243 = vsel %vm238, %v232, 0
        %v246 = vsel %vm238, %v233, 0
        %v249 = vsel %vm238, %v234, 0
        %v252 = vsel %vm238, %v235, 0
        %v255 = vsel %vm238, %v236, 0
        %v258 = vsel %vm238, %v237, 0
        %260 = vmatprep.subr.bf16.mxu0 0
        %261 = vmatpush1.bf16.xpose.msra.mxu0 %v243
        %262 = vmatprep.subr.bf16.mxu0 0
        %263 = vmatpush1.bf16.xpose.msra.mxu0 %v246
        %264 = vmatprep.subr.bf16.mxu0 0
        %265 = vmatpush1.bf16.xpose.msra.mxu0 %v249
        %266 = vmatprep.subr.bf16.mxu0 0
        %267 = vmatpush1.bf16.xpose.msra.mxu0 %v252
        %268 = vmatprep.subr.bf16.mxu0 0
        %269 = vmatpush1.bf16.xpose.msra.mxu0 %v255
        %270 = vmatprep.subr.bf16.mxu0 0
        %271 = vmatpush1.bf16.xpose.msra.mxu0 %v258
        %272 = vmatprep.subr.bf16.mxu0 0
        %273 = vmatpush1.bf16.xpose.msra.mxu0 0
        %274 = vmatprep.subr.bf16.mxu0 0
        %275 = vmatpush1.bf16.xpose.msra.mxu0 0
        %276 = vmatprep.subr.bf16.mxu0 0
        %277 = vmatpush1.bf16.xpose.msra.mxu0 0
        %278 = vmatprep.subr.bf16.mxu0 0
        %279 = vmatpush1.bf16.xpose.msra.mxu0 0
        %280 = vmatprep.subr.bf16.mxu0 0
        %281 = vmatpush1.bf16.xpose.msra.mxu0 0
        %282 = vmatprep.subr.bf16.mxu0 0
        %283 = vmatpush1.bf16.xpose.msra.mxu0 0
        %284 = vmatprep.subr.bf16.mxu0 0
        %285 = vmatpush1.bf16.xpose.msra.mxu0 0
        %286 = vmatprep.subr.bf16.mxu0 0
        %287 = vmatpush1.bf16.xpose.msra.mxu0 0
        %288 = vmatprep.subr.bf16.mxu0 0
        %289 = vmatpush1.bf16.xpose.msra.mxu0 0
        %290 = vmatprep.subr.bf16.mxu0 0
        %291 = vmatpush1.bf16.xpose.msra.mxu0 0
        %292 = vmatprep.mubr.bf16.mxu0 0
        %293 = vmatmul.mubr.bf16.gmra.mrb[0].mxu0 %v240
        %v294 = vpop.f32.mrb[0].mxu0
        %v295 = vadd.f32 0.0, %v294
        %v296 = vpop.f32.mrb[0].mxu0
        %v297 = vpop.f32.mrb[0].mxu0
        %v298 = vpop.f32.mrb[0].mxu0
        %299 = vdwg.mxu0
        %v300 = vpack.c.bf16 %v295, %v295
        %v301 = vmul.bf16 %v300, 1056980736
        %303 = vrot.lane.b32.xlu0 %v300, 96
        %v304 = vpop.permute.xlu0 %303
        %vm305 = vcmask 31744
        %v307 = vsel %vm305, %v301, 0
        %v310 = vsel %vm305, %v304, 0
        %312 = vmatprep.subr.bf16.mxu0 0
        %313 = vmatpush1.bf16.xpose.msra.mxu0 %v310
        %314 = vmatprep.subr.bf16.mxu0 0
        %315 = vmatpush1.bf16.xpose.msra.mxu0 0
        %316 = vmatprep.subr.bf16.mxu0 0
        %317 = vmatpush1.bf16.xpose.msra.mxu0 0
        %318 = vmatprep.subr.bf16.mxu0 0
        %319 = vmatpush1.bf16.xpose.msra.mxu0 0
        %320 = vmatprep.subr.bf16.mxu0 0
        %321 = vmatpush1.bf16.xpose.msra.mxu0 0
        %322 = vmatprep.subr.bf16.mxu0 0
        %323 = vmatpush1.bf16.xpose.msra.mxu0 0
        %324 = vmatprep.subr.bf16.mxu0 0
        %325 = vmatpush1.bf16.xpose.msra.mxu0 0
        %326 = vmatprep.subr.bf16.mxu0 0
        %327 = vmatpush1.bf16.xpose.msra.mxu0 0
        %328 = vmatprep.subr.bf16.mxu0 0
        %329 = vmatpush1.bf16.xpose.msra.mxu0 0
        %330 = vmatprep.subr.bf16.mxu0 0
        %331 = vmatpush1.bf16.xpose.msra.mxu0 0
        %332 = vmatprep.subr.bf16.mxu0 0
        %333 = vmatpush1.bf16.xpose.msra.mxu0 0
        %334 = vmatprep.subr.bf16.mxu0 0
        %335 = vmatpush1.bf16.xpose.msra.mxu0 0
        %336 = vmatprep.subr.bf16.mxu0 0
        %337 = vmatpush1.bf16.xpose.msra.mxu0 0
        %338 = vmatprep.subr.bf16.mxu0 0
        %339 = vmatpush1.bf16.xpose.msra.mxu0 0
        %340 = vmatprep.subr.bf16.mxu0 0
        %341 = vmatpush1.bf16.xpose.msra.mxu0 0
        %342 = vmatprep.subr.bf16.mxu0 0
        %343 = vmatpush1.bf16.xpose.msra.mxu0 0
        %344 = vmatprep.mubr.bf16.mxu0 0
        %345 = vmatmul.mubr.bf16.gmra.mrb[0].mxu0 %v307
        %v346 = vpop.f32.mrb[0].mxu0
        %v347 = vadd.f32 0.0, %v346
        %v348 = vpop.f32.mrb[0].mxu0
        %v349 = vpop.f32.mrb[0].mxu0
        %v350 = vpop.f32.mrb[0].mxu0
        %351 = vdwg.mxu0
        %vm352 = vcmask 64512
        %v353 = vsel %vm352, %v347, -inf
        %354 = vmax.xlane.f32.xlu0 %v353
        %v355 = vpop.xlane.xlu0 %354
        %v356 = vsub.f32 %v347, %v355
        %v357 = vpack.c.bf16 %v356, %v356
        %v359 = vmul.bf16 %v357, 1069105081
        %v360 = vpow.bf16.pop %v359
        %v361 = vunpack.c.l.bf16 %v360
        %v362 = vsel %vm352, %v361, 0.0
        %363 = vadd.xlane.f32.xlu0 %v362
        %v364 = vpop.xlane.xlu0 %363
        %365 = vrot.lane.b32.xlu0 %v300, 64
        %v366 = vpop.permute.xlu0 %365
        %v368 = vsel %vm352, %v360, 0
        %vm370 = vcmask 1043456
        %v372 = vsel %vm370, %v366, 0
        %374 = vmatprep.subr.bf16.mxu0 0
        %375 = vmatpush1.bf16.msra.mxu0 %v372
        %376 = vmatprep.subr.bf16.mxu0 0
        %377 = vmatpush1.bf16.msra.mxu0 0
        %378 = vmatprep.subr.bf16.mxu0 0
        %379 = vmatpush1.bf16.msra.mxu0 0
        %380 = vmatprep.subr.bf16.mxu0 0
        %381 = vmatpush1.bf16.msra.mxu0 0
        %382 = vmatprep.subr.bf16.mxu0 0
        %383 = vmatpush1.bf16.msra.mxu0 0
        %384 = vmatprep.subr.bf16.mxu0 0
        %385 = vmatpush1.bf16.msra.mxu0 0
        %386 = vmatprep.subr.bf16.mxu0 0
        %387 = vmatpush1.bf16.msra.mxu0 0
        %388 = vmatprep.subr.bf16.mxu0 0
        %389 = vmatpush1.bf16.msra.mxu0 0
        %390 = vmatprep.subr.bf16.mxu0 0
        %391 = vmatpush1.bf16.msra.mxu0 0
        %392 = vmatprep.subr.bf16.mxu0 0
        %393 = vmatpush1.bf16.msra.mxu0 0
        %394 = vmatprep.subr.bf16.mxu0 0
        %395 = vmatpush1.bf16.msra.mxu0 0
        %396 = vmatprep.subr.bf16.mxu0 0
        %397 = vmatpush1.bf16.msra.mxu0 0
        %398 = vmatprep.subr.bf16.mxu0 0
        %399 = vmatpush1.bf16.msra.mxu0 0
        %400 = vmatprep.subr.bf16.mxu0 0
        %401 = vmatpush1.bf16.msra.mxu0 0
        %402 = vmatprep.subr.bf16.mxu0 0
        %403 = vmatpush1.bf16.msra.mxu0 0
        %404 = vmatprep.subr.bf16.mxu0 0
        %405 = vmatpush1.bf16.msra.mxu0 0
        %406 = vmatprep.mubr.bf16.mxu0 0
        %407 = vmatmul.mubr.bf16.gmra.mrb[0].mxu0 %v368
        %v408 = vpop.f32.mrb[0].mxu0
        %v409 = vadd.f32 0.0, %v408
        %v410 = vpop.f32.mrb[0].mxu0
        %v411 = vpop.f32.mrb[0].mxu0
        %v412 = vpop.f32.mrb[0].mxu0
        %413 = vdwg.mxu0
        %v414 = vrcp.pop %v364
        %v415 = vmul.f32 %v409, %v414
        %v416 = vpack.c.bf16 %v415, %v415
        %vm417 = vcmask 27648
        %418 = vst.msk [vmem:[#allocation2] sm:$0xf] %vm417, %v416
        %420 = vrot.lane.b32.xlu0 %v301, 124
        %v421 = vpop.permute.xlu0 %420
        %422 = vrot.lane.b32.xlu0 %v300, 92
        %v423 = vpop.permute.xlu0 %422
        %v425 = vsel %vm305, %v421, 0
        %v428 = vsel %vm305, %v423, 0
        %430 = vmatprep.subr.bf16.mxu0 0
        %431 = vmatpush1.bf16.xpose.msra.mxu0 %v428
        %432 = vmatprep.subr.bf16.mxu0 0
        %433 = vmatpush1.bf16.xpose.msra.mxu0 0
        %434 = vmatprep.subr.bf16.mxu0 0
        %435 = vmatpush1.bf16.xpose.msra.mxu0 0
        %436 = vmatprep.subr.bf16.mxu0 0
        %437 = vmatpush1.bf16.xpose.msra.mxu0 0
        %438 = vmatprep.subr.bf16.mxu0 0
        %439 = vmatpush1.bf16.xpose.msra.mxu0 0
        %440 = vmatprep.subr.bf16.mxu0 0
        %441 = vmatpush1.bf16.xpose.msra.mxu0 0
        %442 = vmatprep.subr.bf16.mxu0 0
        %443 = vmatpush1.bf16.xpose.msra.mxu0 0
        %444 = vmatprep.subr.bf16.mxu0 0
        %445 = vmatpush1.bf16.xpose.msra.mxu0 0
        %446 = vmatprep.subr.bf16.mxu0 0
        %447 = vmatpush1.bf16.xpose.msra.mxu0 0
        %448 = vmatprep.subr.bf16.mxu0 0
        %449 = vmatpush1.bf16.xpose.msra.mxu0 0
        %450 = vmatprep.subr.bf16.mxu0 0
        %451 = vmatpush1.bf16.xpose.msra.mxu0 0
        %452 = vmatprep.subr.bf16.mxu0 0
        %453 = vmatpush1.bf16.xpose.msra.mxu0 0
        %454 = vmatprep.subr.bf16.mxu0 0
        %455 = vmatpush1.bf16.xpose.msra.mxu0 0
        %456 = vmatprep.subr.bf16.mxu0 0
        %457 = vmatpush1.bf16.xpose.msra.mxu0 0
        %458 = vmatprep.subr.bf16.mxu0 0
        %459 = vmatpush1.bf16.xpose.msra.mxu0 0
        %460 = vmatprep.subr.bf16.mxu0 0
        %461 = vmatpush1.bf16.xpose.msra.mxu0 0
        %462 = vmatprep.mubr.bf16.mxu0 0
        %463 = vmatmul.mubr.bf16.gmra.mrb[0].mxu0 %v425
        %v464 = vpop.f32.mrb[0].mxu0
        %v465 = vadd.f32 0.0, %v464
        %v466 = vpop.f32.mrb[0].mxu0
        %v467 = vpop.f32.mrb[0].mxu0
        %v468 = vpop.f32.mrb[0].mxu0
        %469 = vdwg.mxu0
        %v470 = vsel %vm352, %v465, -inf
        %471 = vmax.xlane.f32.xlu0 %v470
        %v472 = vpop.xlane.xlu0 %471
        %v473 = vsub.f32 %v465, %v472
        %v474 = vpack.c.bf16 %v473, %v473
        %v476 = vmul.bf16 %v474, 1069105081
        %v477 = vpow.bf16.pop %v476
        %v478 = vunpack.c.l.bf16 %v477
        %v479 = vsel %vm352, %v478, 0.0
        %480 = vadd.xlane.f32.xlu0 %v479
        %v481 = vpop.xlane.xlu0 %480
        %482 = vrot.lane.b32.xlu0 %v300, 60
        %v483 = vpop.permute.xlu0 %482
        %v485 = vsel %vm352, %v477, 0
        %v488 = vsel %vm370, %v483, 0
        %490 = vmatprep.subr.bf16.mxu0 0
        %491 = vmatpush1.bf16.msra.mxu0 %v488
        %492 = vmatprep.subr.bf16.mxu0 0
        %493 = vmatpush1.bf16.msra.mxu0 0
        %494 = vmatprep.subr.bf16.mxu0 0
        %495 = vmatpush1.bf16.msra.mxu0 0
        %496 = vmatprep.subr.bf16.mxu0 0
        %497 = vmatpush1.bf16.msra.mxu0 0
        %498 = vmatprep.subr.bf16.mxu0 0
        %499 = vmatpush1.bf16.msra.mxu0 0
        %500 = vmatprep.subr.bf16.mxu0 0
        %501 = vmatpush1.bf16.msra.mxu0 0
        %502 = vmatprep.subr.bf16.mxu0 0
        %503 = vmatpush1.bf16.msra.mxu0 0
        %504 = vmatprep.subr.bf16.mxu0 0
        %505 = vmatpush1.bf16.msra.mxu0 0
        %506 = vmatprep.subr.bf16.mxu0 0
        %507 = vmatpush1.bf16.msra.mxu0 0
        %508 = vmatprep.subr.bf16.mxu0 0
        %509 = vmatpush1.bf16.msra.mxu0 0
        %510 = vmatprep.subr.bf16.mxu0 0
        %511 = vmatpush1.bf16.msra.mxu0 0
        %512 = vmatprep.subr.bf16.mxu0 0
        %513 = vmatpush1.bf16.msra.mxu0 0
        %514 = vmatprep.subr.bf16.mxu0 0
        %515 = vmatpush1.bf16.msra.mxu0 0
        %516 = vmatprep.subr.bf16.mxu0 0
        %517 = vmatpush1.bf16.msra.mxu0 0
        %518 = vmatprep.subr.bf16.mxu0 0
        %519 = vmatpush1.bf16.msra.mxu0 0
        %520 = vmatprep.subr.bf16.mxu0 0
        %521 = vmatpush1.bf16.msra.mxu0 0
        %522 = vmatprep.mubr.bf16.mxu0 0
        %523 = vmatmul.mubr.bf16.gmra.mrb[0].mxu0 %v485
        %v524 = vpop.f32.mrb[0].mxu0
        %v525 = vadd.f32 0.0, %v524
        %v526 = vpop.f32.mrb[0].mxu0
        %v527 = vpop.f32.mrb[0].mxu0
        %v528 = vpop.f32.mrb[0].mxu0
        %529 = vdwg.mxu0
        %v530 = vrcp.pop %v481
        %v531 = vmul.f32 %v525, %v530
        %v532 = vpack.c.bf16 %v531, %v531
        %v534 = vunpack.c.l.b16 %v532
        %v535 = vpack.c.b16 %v534, %v534
        %536 = vrot.lane.b32.xlu0 %v535, 4
        %v537 = vpop.permute.xlu0 %536
        %vm539 = vcmask 60448
        %540 = vst.msk [vmem:[#allocation2] sm:$0xf] %vm539, %v537
        %541 = vrot.lane.b32.xlu0 %v301, 120
        %v542 = vpop.permute.xlu0 %541
        %543 = vrot.lane.b32.xlu0 %v300, 88
        %v544 = vpop.permute.xlu0 %543
        %v546 = vsel %vm305, %v542, 0
        %v549 = vsel %vm305, %v544, 0
        %551 = vmatprep.subr.bf16.mxu0 0
        %552 = vmatpush1.bf16.xpose.msra.mxu0 %v549
        %553 = vmatprep.subr.bf16.mxu0 0
        %554 = vmatpush1.bf16.xpose.msra.mxu0 0
        %555 = vmatprep.subr.bf16.mxu0 0
        %556 = vmatpush1.bf16.xpose.msra.mxu0 0
        %557 = vmatprep.subr.bf16.mxu0 0
        %558 = vmatpush1.bf16.xpose.msra.mxu0 0
        %559 = vmatprep.subr.bf16.mxu0 0
        %560 = vmatpush1.bf16.xpose.msra.mxu0 0
        %561 = vmatprep.subr.bf16.mxu0 0
        %562 = vmatpush1.bf16.xpose.msra.mxu0 0
        %563 = vmatprep.subr.bf16.mxu0 0
        %564 = vmatpush1.bf16.xpose.msra.mxu0 0
        %565 = vmatprep.subr.bf16.mxu0 0
        %566 = vmatpush1.bf16.xpose.msra.mxu0 0
        %567 = vmatprep.subr.bf16.mxu0 0
        %568 = vmatpush1.bf16.xpose.msra.mxu0 0
        %569 = vmatprep.subr.bf16.mxu0 0
        %570 = vmatpush1.bf16.xpose.msra.mxu0 0
        %571 = vmatprep.subr.bf16.mxu0 0
        %572 = vmatpush1.bf16.xpose.msra.mxu0 0
        %573 = vmatprep.subr.bf16.mxu0 0
        %574 = vmatpush1.bf16.xpose.msra.mxu0 0
        %575 = vmatprep.subr.bf16.mxu0 0
        %576 = vmatpush1.bf16.xpose.msra.mxu0 0
        %577 = vmatprep.subr.bf16.mxu0 0
        %578 = vmatpush1.bf16.xpose.msra.mxu0 0
        %579 = vmatprep.subr.bf16.mxu0 0
        %580 = vmatpush1.bf16.xpose.msra.mxu0 0
        %581 = vmatprep.subr.bf16.mxu0 0
        %582 = vmatpush1.bf16.xpose.msra.mxu0 0
        %583 = vmatprep.mubr.bf16.mxu0 0
        %584 = vmatmul.mubr.bf16.gmra.mrb[0].mxu0 %v546
        %v585 = vpop.f32.mrb[0].mxu0
        %v586 = vadd.f32 0.0, %v585
        %v587 = vpop.f32.mrb[0].mxu0
        %v588 = vpop.f32.mrb[0].mxu0
        %v589 = vpop.f32.mrb[0].mxu0
        %590 = vdwg.mxu0
        %v591 = vsel %vm352, %v586, -inf
        %592 = vmax.xlane.f32.xlu0 %v591
        %v593 = vpop.xlane.xlu0 %592
        %v594 = vsub.f32 %v586, %v593
        %v595 = vpack.c.bf16 %v594, %v594
        %v597 = vmul.bf16 %v595, 1069105081
        %v598 = vpow.bf16.pop %v597
        %v599 = vunpack.c.l.bf16 %v598
        %v600 = vsel %vm352, %v599, 0.0
        %601 = vadd.xlane.f32.xlu0 %v600
        %v602 = vpop.xlane.xlu0 %601
        %603 = vrot.lane.b32.xlu0 %v300, 56
        %v604 = vpop.permute.xlu0 %603
        %v606 = vsel %vm352, %v598, 0
        %v609 = vsel %vm370, %v604, 0
        %611 = vmatprep.subr.bf16.mxu0 0
        %612 = vmatpush1.bf16.msra.mxu0 %v609
        %613 = vmatprep.subr.bf16.mxu0 0
        %614 = vmatpush1.bf16.msra.mxu0 0
        %615 = vmatprep.subr.bf16.mxu0 0
        %616 = vmatpush1.bf16.msra.mxu0 0
        %617 = vmatprep.subr.bf16.mxu0 0
        %618 = vmatpush1.bf16.msra.mxu0 0
        %619 = vmatprep.subr.bf16.mxu0 0
        %620 = vmatpush1.bf16.msra.mxu0 0
        %621 = vmatprep.subr.bf16.mxu0 0
        %622 = vmatpush1.bf16.msra.mxu0 0
        %623 = vmatprep.subr.bf16.mxu0 0
        %624 = vmatpush1.bf16.msra.mxu0 0
        %625 = vmatprep.subr.bf16.mxu0 0
        %626 = vmatpush1.bf16.msra.mxu0 0
        %627 = vmatprep.subr.bf16.mxu0 0
        %628 = vmatpush1.bf16.msra.mxu0 0
        %629 = vmatprep.subr.bf16.mxu0 0
        %630 = vmatpush1.bf16.msra.mxu0 0
        %631 = vmatprep.subr.bf16.mxu0 0
        %632 = vmatpush1.bf16.msra.mxu0 0
        %633 = vmatprep.subr.bf16.mxu0 0
        %634 = vmatpush1.bf16.msra.mxu0 0
        %635 = vmatprep.subr.bf16.mxu0 0
        %636 = vmatpush1.bf16.msra.mxu0 0
        %637 = vmatprep.subr.bf16.mxu0 0
        %638 = vmatpush1.bf16.msra.mxu0 0
        %639 = vmatprep.subr.bf16.mxu0 0
        %640 = vmatpush1.bf16.msra.mxu0 0
        %641 = vmatprep.subr.bf16.mxu0 0
        %642 = vmatpush1.bf16.msra.mxu0 0
        %643 = vmatprep.mubr.bf16.mxu0 0
        %644 = vmatmul.mubr.bf16.gmra.mrb[0].mxu0 %v606
        %v645 = vpop.f32.mrb[0].mxu0
        %v646 = vadd.f32 0.0, %v645
        %v647 = vpop.f32.mrb[0].mxu0
        %v648 = vpop.f32.mrb[0].mxu0
        %v649 = vpop.f32.mrb[0].mxu0
        %650 = vdwg.mxu0
        %v651 = vrcp.pop %v602
        %v652 = vmul.f32 %v646, %v651
        %v653 = vpack.c.bf16 %v652, %v652
        %v655 = vunpack.c.l.b16 %v653
        %v656 = vpack.c.b16 %v655, %v655
        %657 = vrot.lane.b32.xlu0 %v656, 8
        %v658 = vpop.permute.xlu0 %657
        %vm660 = vcmask 93248
        %661 = vst.msk [vmem:[#allocation2] sm:$0xf] %vm660, %v658
        %662 = vrot.lane.b32.xlu0 %v301, 116
        %v663 = vpop.permute.xlu0 %662
        %664 = vrot.lane.b32.xlu0 %v300, 84
        %v665 = vpop.permute.xlu0 %664
        %v667 = vsel %vm305, %v663, 0
        %v670 = vsel %vm305, %v665, 0
        %672 = vmatprep.subr.bf16.mxu0 0
        %673 = vmatpush1.bf16.xpose.msra.mxu0 %v670
        %674 = vmatprep.subr.bf16.mxu0 0
        %675 = vmatpush1.bf16.xpose.msra.mxu0 0
        %676 = vmatprep.subr.bf16.mxu0 0
        %677 = vmatpush1.bf16.xpose.msra.mxu0 0
        %678 = vmatprep.subr.bf16.mxu0 0
        %679 = vmatpush1.bf16.xpose.msra.mxu0 0
        %680 = vmatprep.subr.bf16.mxu0 0
        %681 = vmatpush1.bf16.xpose.msra.mxu0 0
        %682 = vmatprep.subr.bf16.mxu0 0
        %683 = vmatpush1.bf16.xpose.msra.mxu0 0
        %684 = vmatprep.subr.bf16.mxu0 0
        %685 = vmatpush1.bf16.xpose.msra.mxu0 0
        %686 = vmatprep.subr.bf16.mxu0 0
        %687 = vmatpush1.bf16.xpose.msra.mxu0 0
        %688 = vmatprep.subr.bf16.mxu0 0
        %689 = vmatpush1.bf16.xpose.msra.mxu0 0
        %690 = vmatprep.subr.bf16.mxu0 0
        %691 = vmatpush1.bf16.xpose.msra.mxu0 0
        %692 = vmatprep.subr.bf16.mxu0 0
        %693 = vmatpush1.bf16.xpose.msra.mxu0 0
        %694 = vmatprep.subr.bf16.mxu0 0
        %695 = vmatpush1.bf16.xpose.msra.mxu0 0
        %696 = vmatprep.subr.bf16.mxu0 0
        %697 = vmatpush1.bf16.xpose.msra.mxu0 0
        %698 = vmatprep.subr.bf16.mxu0 0
        %699 = vmatpush1.bf16.xpose.msra.mxu0 0
        %700 = vmatprep.subr.bf16.mxu0 0
        %701 = vmatpush1.bf16.xpose.msra.mxu0 0
        %702 = vmatprep.subr.bf16.mxu0 0
        %703 = vmatpush1.bf16.xpose.msra.mxu0 0
        %704 = vmatprep.mubr.bf16.mxu0 0
        %705 = vmatmul.mubr.bf16.gmra.mrb[0].mxu0 %v667
        %v706 = vpop.f32.mrb[0].mxu0
        %v707 = vadd.f32 0.0, %v706
        %v708 = vpop.f32.mrb[0].mxu0
        %v709 = vpop.f32.mrb[0].mxu0
        %v710 = vpop.f32.mrb[0].mxu0
        %711 = vdwg.mxu0
        %v712 = vsel %vm352, %v707, -inf
        %713 = vmax.xlane.f32.xlu0 %v712
        %v714 = vpop.xlane.xlu0 %713
        %v715 = vsub.f32 %v707, %v714
        %v716 = vpack.c.bf16 %v715, %v715
        %v718 = vmul.bf16 %v716, 1069105081
        %v719 = vpow.bf16.pop %v718
        %v720 = vunpack.c.l.bf16 %v719
        %v721 = vsel %vm352, %v720, 0.0
        %722 = vadd.xlane.f32.xlu0 %v721
        %v723 = vpop.xlane.xlu0 %722
        %724 = vrot.lane.b32.xlu0 %v300, 52
        %v725 = vpop.permute.xlu0 %724
        %v727 = vsel %vm352, %v719, 0
        %v730 = vsel %vm370, %v725, 0
        %732 = vmatprep.subr.bf16.mxu0 0
        %733 = vmatpush1.bf16.msra.mxu0 %v730
        %734 = vmatprep.subr.bf16.mxu0 0
        %735 = vmatpush1.bf16.msra.mxu0 0
        %736 = vmatprep.subr.bf16.mxu0 0
        %737 = vmatpush1.bf16.msra.mxu0 0
        %738 = vmatprep.subr.bf16.mxu0 0
        %739 = vmatpush1.bf16.msra.mxu0 0
        %740 = vmatprep.subr.bf16.mxu0 0
        %741 = vmatpush1.bf16.msra.mxu0 0
        %742 = vmatprep.subr.bf16.mxu0 0
        %743 = vmatpush1.bf16.msra.mxu0 0
        %744 = vmatprep.subr.bf16.mxu0 0
        %745 = vmatpush1.bf16.msra.mxu0 0
        %746 = vmatprep.subr.bf16.mxu0 0
        %747 = vmatpush1.bf16.msra.mxu0 0
        %748 = vmatprep.subr.bf16.mxu0 0
        %749 = vmatpush1.bf16.msra.mxu0 0
        %750 = vmatprep.subr.bf16.mxu0 0
        %751 = vmatpush1.bf16.msra.mxu0 0
        %752 = vmatprep.subr.bf16.mxu0 0
        %753 = vmatpush1.bf16.msra.mxu0 0
        %754 = vmatprep.subr.bf16.mxu0 0
        %755 = vmatpush1.bf16.msra.mxu0 0
        %756 = vmatprep.subr.bf16.mxu0 0
        %757 = vmatpush1.bf16.msra.mxu0 0
        %758 = vmatprep.subr.bf16.mxu0 0
        %759 = vmatpush1.bf16.msra.mxu0 0
        %760 = vmatprep.subr.bf16.mxu0 0
        %761 = vmatpush1.bf16.msra.mxu0 0
        %762 = vmatprep.subr.bf16.mxu0 0
        %763 = vmatpush1.bf16.msra.mxu0 0
        %764 = vmatprep.mubr.bf16.mxu0 0
        %765 = vmatmul.mubr.bf16.gmra.mrb[0].mxu0 %v727
        %v766 = vpop.f32.mrb[0].mxu0
        %v767 = vadd.f32 0.0, %v766
        %v768 = vpop.f32.mrb[0].mxu0
        %v769 = vpop.f32.mrb[0].mxu0
        %v770 = vpop.f32.mrb[0].mxu0
        %771 = vdwg.mxu0
        %v772 = vrcp.pop %v723
        %v773 = vmul.f32 %v767, %v772
        %v774 = vpack.c.bf16 %v773, %v773
        %v776 = vunpack.c.l.b16 %v774
        %v777 = vpack.c.b16 %v776, %v776
        %778 = vrot.lane.b32.xlu0 %v777, 12
        %v779 = vpop.permute.xlu0 %778
        %vm781 = vcmask 126048
        %782 = vst.msk [vmem:[#allocation2] sm:$0xf] %vm781, %v779
        %783 = vrot.lane.b32.xlu0 %v301, 112
        %v784 = vpop.permute.xlu0 %783
        %785 = vrot.lane.b32.xlu0 %v300, 80
        %v786 = vpop.permute.xlu0 %785
        %v788 = vsel %vm305, %v784, 0
        %v791 = vsel %vm305, %v786, 0
        %793 = vmatprep.subr.bf16.mxu0 0
        %794 = vmatpush1.bf16.xpose.msra.mxu0 %v791
        %795 = vmatprep.subr.bf16.mxu0 0
        %796 = vmatpush1.bf16.xpose.msra.mxu0 0
        %797 = vmatprep.subr.bf16.mxu0 0
        %798 = vmatpush1.bf16.xpose.msra.mxu0 0
        %799 = vmatprep.subr.bf16.mxu0 0
        %800 = vmatpush1.bf16.xpose.msra.mxu0 0
        %801 = vmatprep.subr.bf16.mxu0 0
        %802 = vmatpush1.bf16.xpose.msra.mxu0 0
        %803 = vmatprep.subr.bf16.mxu0 0
        %804 = vmatpush1.bf16.xpose.msra.mxu0 0
        %805 = vmatprep.subr.bf16.mxu0 0
        %806 = vmatpush1.bf16.xpose.msra.mxu0 0
        %807 = vmatprep.subr.bf16.mxu0 0
        %808 = vmatpush1.bf16.xpose.msra.mxu0 0
        %809 = vmatprep.subr.bf16.mxu0 0
        %810 = vmatpush1.bf16.xpose.msra.mxu0 0
        %811 = vmatprep.subr.bf16.mxu0 0
        %812 = vmatpush1.bf16.xpose.msra.mxu0 0
        %813 = vmatprep.subr.bf16.mxu0 0
        %814 = vmatpush1.bf16.xpose.msra.mxu0 0
        %815 = vmatprep.subr.bf16.mxu0 0
        %816 = vmatpush1.bf16.xpose.msra.mxu0 0
        %817 = vmatprep.subr.bf16.mxu0 0
        %818 = vmatpush1.bf16.xpose.msra.mxu0 0
        %819 = vmatprep.subr.bf16.mxu0 0
        %820 = vmatpush1.bf16.xpose.msra.mxu0 0
        %821 = vmatprep.subr.bf16.mxu0 0
        %822 = vmatpush1.bf16.xpose.msra.mxu0 0
        %823 = vmatprep.subr.bf16.mxu0 0
        %824 = vmatpush1.bf16.xpose.msra.mxu0 0
        %825 = vmatprep.mubr.bf16.mxu0 0
        %826 = vmatmul.mubr.bf16.gmra.mrb[0].mxu0 %v788
        %v827 = vpop.f32.mrb[0].mxu0
        %v828 = vadd.f32 0.0, %v827
        %v829 = vpop.f32.mrb[0].mxu0
        %v830 = vpop.f32.mrb[0].mxu0
        %v831 = vpop.f32.mrb[0].mxu0
        %832 = vdwg.mxu0
        %v833 = vsel %vm352, %v828, -inf
        %834 = vmax.xlane.f32.xlu0 %v833
        %v835 = vpop.xlane.xlu0 %834
        %v836 = vsub.f32 %v828, %v835
        %v837 = vpack.c.bf16 %v836, %v836
        %v839 = vmul.bf16 %v837, 1069105081
        %v840 = vpow.bf16.pop %v839
        %v841 = vunpack.c.l.bf16 %v840
        %v842 = vsel %vm352, %v841, 0.0
        %843 = vadd.xlane.f32.xlu0 %v842
        %v844 = vpop.xlane.xlu0 %843
        %845 = vrot.lane.b32.xlu0 %v300, 48
        %v846 = vpop.permute.xlu0 %845
        %v848 = vsel %vm352, %v840, 0
        %v851 = vsel %vm370, %v846, 0
        %853 = vmatprep.subr.bf16.mxu0 0
        %854 = vmatpush1.bf16.msra.mxu0 %v851
        %855 = vmatprep.subr.bf16.mxu0 0
        %856 = vmatpush1.bf16.msra.mxu0 0
        %857 = vmatprep.subr.bf16.mxu0 0
        %858 = vmatpush1.bf16.msra.mxu0 0
        %859 = vmatprep.subr.bf16.mxu0 0
        %860 = vmatpush1.bf16.msra.mxu0 0
        %861 = vmatprep.subr.bf16.mxu0 0
        %862 = vmatpush1.bf16.msra.mxu0 0
        %863 = vmatprep.subr.bf16.mxu0 0
        %864 = vmatpush1.bf16.msra.mxu0 0
        %865 = vmatprep.subr.bf16.mxu0 0
        %866 = vmatpush1.bf16.msra.mxu0 0
        %867 = vmatprep.subr.bf16.mxu0 0
        %868 = vmatpush1.bf16.msra.mxu0 0
        %869 = vmatprep.subr.bf16.mxu0 0
        %870 = vmatpush1.bf16.msra.mxu0 0
        %871 = vmatprep.subr.bf16.mxu0 0
        %872 = vmatpush1.bf16.msra.mxu0 0
        %873 = vmatprep.subr.bf16.mxu0 0
        %874 = vmatpush1.bf16.msra.mxu0 0
        %875 = vmatprep.subr.bf16.mxu0 0
        %876 = vmatpush1.bf16.msra.mxu0 0
        %877 = vmatprep.subr.bf16.mxu0 0
        %878 = vmatpush1.bf16.msra.mxu0 0
        %879 = vmatprep.subr.bf16.mxu0 0
        %880 = vmatpush1.bf16.msra.mxu0 0
        %881 = vmatprep.subr.bf16.mxu0 0
        %882 = vmatpush1.bf16.msra.mxu0 0
        %883 = vmatprep.subr.bf16.mxu0 0
        %884 = vmatpush1.bf16.msra.mxu0 0
        %885 = vmatprep.mubr.bf16.mxu0 0
        %886 = vmatmul.mubr.bf16.gmra.mrb[0].mxu0 %v848
        %v887 = vpop.f32.mrb[0].mxu0
        %v888 = vadd.f32 0.0, %v887
        %v889 = vpop.f32.mrb[0].mxu0
        %v890 = vpop.f32.mrb[0].mxu0
        %v891 = vpop.f32.mrb[0].mxu0
        %892 = vdwg.mxu0
        %v893 = vrcp.pop %v844
        %v894 = vmul.f32 %v888, %v893
        %v895 = vpack.c.bf16 %v894, %v894
        %v897 = vunpack.c.l.b16 %v895
        %v898 = vpack.c.b16 %v897, %v897
        %899 = vrot.lane.b32.xlu0 %v898, 16
        %v900 = vpop.permute.xlu0 %899
        %vm902 = vcmask 158848
        %903 = vst.msk [vmem:[#allocation2] sm:$0xf] %vm902, %v900
        %904 = vrot.lane.b32.xlu0 %v301, 108
        %v905 = vpop.permute.xlu0 %904
        %906 = vrot.lane.b32.xlu0 %v300, 76
        %v907 = vpop.permute.xlu0 %906
        %v909 = vsel %vm305, %v905, 0
        %v912 = vsel %vm305, %v907, 0
        %914 = vmatprep.subr.bf16.mxu0 0
        %915 = vmatpush1.bf16.xpose.msra.mxu0 %v912
        %916 = vmatprep.subr.bf16.mxu0 0
        %917 = vmatpush1.bf16.xpose.msra.mxu0 0
        %918 = vmatprep.subr.bf16.mxu0 0
        %919 = vmatpush1.bf16.xpose.msra.mxu0 0
        %920 = vmatprep.subr.bf16.mxu0 0
        %921 = vmatpush1.bf16.xpose.msra.mxu0 0
        %922 = vmatprep.subr.bf16.mxu0 0
        %923 = vmatpush1.bf16.xpose.msra.mxu0 0
        %924 = vmatprep.subr.bf16.mxu0 0
        %925 = vmatpush1.bf16.xpose.msra.mxu0 0
        %926 = vmatprep.subr.bf16.mxu0 0
        %927 = vmatpush1.bf16.xpose.msra.mxu0 0
        %928 = vmatprep.subr.bf16.mxu0 0
        %929 = vmatpush1.bf16.xpose.msra.mxu0 0
        %930 = vmatprep.subr.bf16.mxu0 0
        %931 = vmatpush1.bf16.xpose.msra.mxu0 0
        %932 = vmatprep.subr.bf16.mxu0 0
        %933 = vmatpush1.bf16.xpose.msra.mxu0 0
        %934 = vmatprep.subr.bf16.mxu0 0
        %935 = vmatpush1.bf16.xpose.msra.mxu0 0
        %936 = vmatprep.subr.bf16.mxu0 0
        %937 = vmatpush1.bf16.xpose.msra.mxu0 0
        %938 = vmatprep.subr.bf16.mxu0 0
        %939 = vmatpush1.bf16.xpose.msra.mxu0 0
        %940 = vmatprep.subr.bf16.mxu0 0
        %941 = vmatpush1.bf16.xpose.msra.mxu0 0
        %942 = vmatprep.subr.bf16.mxu0 0
        %943 = vmatpush1.bf16.xpose.msra.mxu0 0
        %944 = vmatprep.subr.bf16.mxu0 0
        %945 = vmatpush1.bf16.xpose.msra.mxu0 0
        %946 = vmatprep.mubr.bf16.mxu0 0
        %947 = vmatmul.mubr.bf16.gmra.mrb[0].mxu0 %v909
        %v948 = vpop.f32.mrb[0].mxu0
        %v949 = vadd.f32 0.0, %v948
        %v950 = vpop.f32.mrb[0].mxu0
        %v951 = vpop.f32.mrb[0].mxu0
        %v952 = vpop.f32.mrb[0].mxu0
        %953 = vdwg.mxu0
        %v954 = vsel %vm352, %v949, -inf
        %955 = vmax.xlane.f32.xlu0 %v954
        %v956 = vpop.xlane.xlu0 %955
        %v957 = vsub.f32 %v949, %v956
        %v958 = vpack.c.bf16 %v957, %v957
        %v960 = vmul.bf16 %v958, 1069105081
        %v961 = vpow.bf16.pop %v960
        %v962 = vunpack.c.l.bf16 %v961
        %v963 = vsel %vm352, %v962, 0.0
        %964 = vadd.xlane.f32.xlu0 %v963
        %v965 = vpop.xlane.xlu0 %964
        %966 = vrot.lane.b32.xlu0 %v300, 44
        %v967 = vpop.permute.xlu0 %966
        %v969 = vsel %vm352, %v961, 0
        %v972 = vsel %vm370, %v967, 0
        %974 = vmatprep.subr.bf16.mxu0 0
        %975 = vmatpush1.bf16.msra.mxu0 %v972
        %976 = vmatprep.subr.bf16.mxu0 0
        %977 = vmatpush1.bf16.msra.mxu0 0
        %978 = vmatprep.subr.bf16.mxu0 0
        %979 = vmatpush1.bf16.msra.mxu0 0
        %980 = vmatprep.subr.bf16.mxu0 0
        %981 = vmatpush1.bf16.msra.mxu0 0
        %982 = vmatprep.subr.bf16.mxu0 0
        %983 = vmatpush1.bf16.msra.mxu0 0
        %984 = vmatprep.subr.bf16.mxu0 0
        %985 = vmatpush1.bf16.msra.mxu0 0
        %986 = vmatprep.subr.bf16.mxu0 0
        %987 = vmatpush1.bf16.msra.mxu0 0
        %988 = vmatprep.subr.bf16.mxu0 0
        %989 = vmatpush1.bf16.msra.mxu0 0
        %990 = vmatprep.subr.bf16.mxu0 0
        %991 = vmatpush1.bf16.msra.mxu0 0
        %992 = vmatprep.subr.bf16.mxu0 0
        %993 = vmatpush1.bf16.msra.mxu0 0
        %994 = vmatprep.subr.bf16.mxu0 0
        %995 = vmatpush1.bf16.msra.mxu0 0
        %996 = vmatprep.subr.bf16.mxu0 0
        %997 = vmatpush1.bf16.msra.mxu0 0
        %998 = vmatprep.subr.bf16.mxu0 0
        %999 = vmatpush1.bf16.msra.mxu0 0
        %1000 = vmatprep.subr.bf16.mxu0 0
        %1001 = vmatpush1.bf16.msra.mxu0 0
        %1002 = vmatprep.subr.bf16.mxu0 0
        %1003 = vmatpush1.bf16.msra.mxu0 0
        %1004 = vmatprep.subr.bf16.mxu0 0
        %1005 = vmatpush1.bf16.msra.mxu0 0
        %1006 = vmatprep.mubr.bf16.mxu0 0
        %1007 = vmatmul.mubr.bf16.gmra.mrb[0].mxu0 %v969
        %v1008 = vpop.f32.mrb[0].mxu0
        %v1009 = vadd.f32 0.0, %v1008
        %v1010 = vpop.f32.mrb[0].mxu0
        %v1011 = vpop.f32.mrb[0].mxu0
        %v1012 = vpop.f32.mrb[0].mxu0
        %1013 = vdwg.mxu0
        %v1014 = vrcp.pop %v965
        %v1015 = vmul.f32 %v1009, %v1014
        %v1016 = vpack.c.bf16 %v1015, %v1015
        %v1018 = vunpack.c.l.b16 %v1016
        %v1019 = vpack.c.b16 %v1018, %v1018
        %1020 = vrot.lane.b32.xlu0 %v1019, 20
        %v1021 = vpop.permute.xlu0 %1020
        %vm1023 = vcmask 191648
        %1024 = vst.msk [vmem:[#allocation2] sm:$0xf] %vm1023, %v1021
        %1025 = vrot.lane.b32.xlu0 %v301, 104
        %v1026 = vpop.permute.xlu0 %1025
        %1027 = vrot.lane.b32.xlu0 %v300, 72
        %v1028 = vpop.permute.xlu0 %1027
        %v1030 = vsel %vm305, %v1026, 0
        %v1033 = vsel %vm305, %v1028, 0
        %1035 = vmatprep.subr.bf16.mxu0 0
        %1036 = vmatpush1.bf16.xpose.msra.mxu0 %v1033
        %1037 = vmatprep.subr.bf16.mxu0 0
        %1038 = vmatpush1.bf16.xpose.msra.mxu0 0
        %1039 = vmatprep.subr.bf16.mxu0 0
        %1040 = vmatpush1.bf16.xpose.msra.mxu0 0
        %1041 = vmatprep.subr.bf16.mxu0 0
        %1042 = vmatpush1.bf16.xpose.msra.mxu0 0
        %1043 = vmatprep.subr.bf16.mxu0 0
        %1044 = vmatpush1.bf16.xpose.msra.mxu0 0
        %1045 = vmatprep.subr.bf16.mxu0 0
        %1046 = vmatpush1.bf16.xpose.msra.mxu0 0
        %1047 = vmatprep.subr.bf16.mxu0 0
        %1048 = vmatpush1.bf16.xpose.msra.mxu0 0
        %1049 = vmatprep.subr.bf16.mxu0 0
        %1050 = vmatpush1.bf16.xpose.msra.mxu0 0
        %1051 = vmatprep.subr.bf16.mxu0 0
        %1052 = vmatpush1.bf16.xpose.msra.mxu0 0
        %1053 = vmatprep.subr.bf16.mxu0 0
        %1054 = vmatpush1.bf16.xpose.msra.mxu0 0
        %1055 = vmatprep.subr.bf16.mxu0 0
        %1056 = vmatpush1.bf16.xpose.msra.mxu0 0
        %1057 = vmatprep.subr.bf16.mxu0 0
        %1058 = vmatpush1.bf16.xpose.msra.mxu0 0
        %1059 = vmatprep.subr.bf16.mxu0 0
        %1060 = vmatpush1.bf16.xpose.msra.mxu0 0
        %1061 = vmatprep.subr.bf16.mxu0 0
        %1062 = vmatpush1.bf16.xpose.msra.mxu0 0
        %1063 = vmatprep.subr.bf16.mxu0 0
        %1064 = vmatpush1.bf16.xpose.msra.mxu0 0
        %1065 = vmatprep.subr.bf16.mxu0 0
        %1066 = vmatpush1.bf16.xpose.msra.mxu0 0
        %1067 = vmatprep.mubr.bf16.mxu0 0
        %1068 = vmatmul.mubr.bf16.gmra.mrb[0].mxu0 %v1030
        %v1069 = vpop.f32.mrb[0].mxu0
        %v1070 = vadd.f32 0.0, %v1069
        %v1071 = vpop.f32.mrb[0].mxu0
        %v1072 = vpop.f32.mrb[0].mxu0
        %v1073 = vpop.f32.mrb[0].mxu0
        %1074 = vdwg.mxu0
        %v1075 = vsel %vm352, %v1070, -inf
        %1076 = vmax.xlane.f32.xlu0 %v1075
        %v1077 = vpop.xlane.xlu0 %1076
        %v1078 = vsub.f32 %v1070, %v1077
        %v1079 = vpack.c.bf16 %v1078, %v1078
        %v1081 = vmul.bf16 %v1079, 1069105081
        %v1082 = vpow.bf16.pop %v1081
        %v1083 = vunpack.c.l.bf16 %v1082
        %v1084 = vsel %vm352, %v1083, 0.0
        %1085 = vadd.xlane.f32.xlu0 %v1084
        %v1086 = vpop.xlane.xlu0 %1085
        %1087 = vrot.lane.b32.xlu0 %v300, 40
        %v1088 = vpop.permute.xlu0 %1087
        %v1090 = vsel %vm352, %v1082, 0
        %v1093 = vsel %vm370, %v1088, 0
        %1095 = vmatprep.subr.bf16.mxu0 0
        %1096 = vmatpush1.bf16.msra.mxu0 %v1093
        %1097 = vmatprep.subr.bf16.mxu0 0
        %1098 = vmatpush1.bf16.msra.mxu0 0
        %1099 = vmatprep.subr.bf16.mxu0 0
        %1100 = vmatpush1.bf16.msra.mxu0 0
        %1101 = vmatprep.subr.bf16.mxu0 0
        %1102 = vmatpush1.bf16.msra.mxu0 0
        %1103 = vmatprep.subr.bf16.mxu0 0
        %1104 = vmatpush1.bf16.msra.mxu0 0
        %1105 = vmatprep.subr.bf16.mxu0 0
        %1106 = vmatpush1.bf16.msra.mxu0 0
        %1107 = vmatprep.subr.bf16.mxu0 0
        %1108 = vmatpush1.bf16.msra.mxu0 0
        %1109 = vmatprep.subr.bf16.mxu0 0
        %1110 = vmatpush1.bf16.msra.mxu0 0
        %1111 = vmatprep.subr.bf16.mxu0 0
        %1112 = vmatpush1.bf16.msra.mxu0 0
        %1113 = vmatprep.subr.bf16.mxu0 0
        %1114 = vmatpush1.bf16.msra.mxu0 0
        %1115 = vmatprep.subr.bf16.mxu0 0
        %1116 = vmatpush1.bf16.msra.mxu0 0
        %1117 = vmatprep.subr.bf16.mxu0 0
        %1118 = vmatpush1.bf16.msra.mxu0 0
        %1119 = vmatprep.subr.bf16.mxu0 0
        %1120 = vmatpush1.bf16.msra.mxu0 0
        %1121 = vmatprep.subr.bf16.mxu0 0
        %1122 = vmatpush1.bf16.msra.mxu0 0
        %1123 = vmatprep.subr.bf16.mxu0 0
        %1124 = vmatpush1.bf16.msra.mxu0 0
        %1125 = vmatprep.subr.bf16.mxu0 0
        %1126 = vmatpush1.bf16.msra.mxu0 0
        %1127 = vmatprep.mubr.bf16.mxu0 0
        %1128 = vmatmul.mubr.bf16.gmra.mrb[0].mxu0 %v1090
        %v1129 = vpop.f32.mrb[0].mxu0
        %v1130 = vadd.f32 0.0, %v1129
        %v1131 = vpop.f32.mrb[0].mxu0
        %v1132 = vpop.f32.mrb[0].mxu0
        %v1133 = vpop.f32.mrb[0].mxu0
        %1134 = vdwg.mxu0
        %v1135 = vrcp.pop %v1086
        %v1136 = vmul.f32 %v1130, %v1135
        %v1137 = vpack.c.bf16 %v1136, %v1136
        %v1139 = vunpack.c.l.b16 %v1137
        %v1140 = vpack.c.b16 %v1139, %v1139
        %1141 = vrot.lane.b32.xlu0 %v1140, 24
        %v1142 = vpop.permute.xlu0 %1141
        %vm1144 = vcmask 224448
        %1145 = vst.msk [vmem:[#allocation2] sm:$0xf] %vm1144, %v1142
        %1146 = vrot.lane.b32.xlu0 %v301, 100
        %v1147 = vpop.permute.xlu0 %1146
        %1148 = vrot.lane.b32.xlu0 %v300, 68
        %v1149 = vpop.permute.xlu0 %1148
        %v1151 = vsel %vm305, %v1147, 0
        %v1154 = vsel %vm305, %v1149, 0
        %1156 = vmatprep.subr.bf16.mxu0 0
        %1157 = vmatpush1.bf16.xpose.msra.mxu0 %v1154
        %1158 = vmatprep.subr.bf16.mxu0 0
        %1159 = vmatpush1.bf16.xpose.msra.mxu0 0
        %1160 = vmatprep.subr.bf16.mxu0 0
        %1161 = vmatpush1.bf16.xpose.msra.mxu0 0
        %1162 = vmatprep.subr.bf16.mxu0 0
        %1163 = vmatpush1.bf16.xpose.msra.mxu0 0
        %1164 = vmatprep.subr.bf16.mxu0 0
        %1165 = vmatpush1.bf16.xpose.msra.mxu0 0
        %1166 = vmatprep.subr.bf16.mxu0 0
        %1167 = vmatpush1.bf16.xpose.msra.mxu0 0
        %1168 = vmatprep.subr.bf16.mxu0 0
        %1169 = vmatpush1.bf16.xpose.msra.mxu0 0
        %1170 = vmatprep.subr.bf16.mxu0 0
        %1171 = vmatpush1.bf16.xpose.msra.mxu0 0
        %1172 = vmatprep.subr.bf16.mxu0 0
        %1173 = vmatpush1.bf16.xpose.msra.mxu0 0
        %1174 = vmatprep.subr.bf16.mxu0 0
        %1175 = vmatpush1.bf16.xpose.msra.mxu0 0
        %1176 = vmatprep.subr.bf16.mxu0 0
        %1177 = vmatpush1.bf16.xpose.msra.mxu0 0
        %1178 = vmatprep.subr.bf16.mxu0 0
        %1179 = vmatpush1.bf16.xpose.msra.mxu0 0
        %1180 = vmatprep.subr.bf16.mxu0 0
        %1181 = vmatpush1.bf16.xpose.msra.mxu0 0
        %1182 = vmatprep.subr.bf16.mxu0 0
        %1183 = vmatpush1.bf16.xpose.msra.mxu0 0
        %1184 = vmatprep.subr.bf16.mxu0 0
        %1185 = vmatpush1.bf16.xpose.msra.mxu0 0
        %1186 = vmatprep.subr.bf16.mxu0 0
        %1187 = vmatpush1.bf16.xpose.msra.mxu0 0
        %1188 = vmatprep.mubr.bf16.mxu0 0
        %1189 = vmatmul.mubr.bf16.gmra.mrb[0].mxu0 %v1151
        %v1190 = vpop.f32.mrb[0].mxu0
        %v1191 = vadd.f32 0.0, %v1190
        %v1192 = vpop.f32.mrb[0].mxu0
        %v1193 = vpop.f32.mrb[0].mxu0
        %v1194 = vpop.f32.mrb[0].mxu0
        %1195 = vdwg.mxu0
        %v1196 = vsel %vm352, %v1191, -inf
        %1197 = vmax.xlane.f32.xlu0 %v1196
        %v1198 = vpop.xlane.xlu0 %1197
        %v1199 = vsub.f32 %v1191, %v1198
        %v1200 = vpack.c.bf16 %v1199, %v1199
        %v1202 = vmul.bf16 %v1200, 1069105081
        %v1203 = vpow.bf16.pop %v1202
        %v1204 = vunpack.c.l.bf16 %v1203
        %v1205 = vsel %vm352, %v1204, 0.0
        %1206 = vadd.xlane.f32.xlu0 %v1205
        %v1207 = vpop.xlane.xlu0 %1206
        %1208 = vrot.lane.b32.xlu0 %v300, 36
        %v1209 = vpop.permute.xlu0 %1208
        %v1211 = vsel %vm352, %v1203, 0
        %v1214 = vsel %vm370, %v1209, 0
        %1216 = vmatprep.subr.bf16.mxu0 0
        %1217 = vmatpush1.bf16.msra.mxu0 %v1214
        %1218 = vmatprep.subr.bf16.mxu0 0
        %1219 = vmatpush1.bf16.msra.mxu0 0
        %1220 = vmatprep.subr.bf16.mxu0 0
        %1221 = vmatpush1.bf16.msra.mxu0 0
        %1222 = vmatprep.subr.bf16.mxu0 0
        %1223 = vmatpush1.bf16.msra.mxu0 0
        %1224 = vmatprep.subr.bf16.mxu0 0
        %1225 = vmatpush1.bf16.msra.mxu0 0
        %1226 = vmatprep.subr.bf16.mxu0 0
        %1227 = vmatpush1.bf16.msra.mxu0 0
        %1228 = vmatprep.subr.bf16.mxu0 0
        %1229 = vmatpush1.bf16.msra.mxu0 0
        %1230 = vmatprep.subr.bf16.mxu0 0
        %1231 = vmatpush1.bf16.msra.mxu0 0
        %1232 = vmatprep.subr.bf16.mxu0 0
        %1233 = vmatpush1.bf16.msra.mxu0 0
        %1234 = vmatprep.subr.bf16.mxu0 0
        %1235 = vmatpush1.bf16.msra.mxu0 0
        %1236 = vmatprep.subr.bf16.mxu0 0
        %1237 = vmatpush1.bf16.msra.mxu0 0
        %1238 = vmatprep.subr.bf16.mxu0 0
        %1239 = vmatpush1.bf16.msra.mxu0 0
        %1240 = vmatprep.subr.bf16.mxu0 0
        %1241 = vmatpush1.bf16.msra.mxu0 0
        %1242 = vmatprep.subr.bf16.mxu0 0
        %1243 = vmatpush1.bf16.msra.mxu0 0
        %1244 = vmatprep.subr.bf16.mxu0 0
        %1245 = vmatpush1.bf16.msra.mxu0 0
        %1246 = vmatprep.subr.bf16.mxu0 0
        %1247 = vmatpush1.bf16.msra.mxu0 0
        %1248 = vmatprep.mubr.bf16.mxu0 0
        %1249 = vmatmul.mubr.bf16.gmra.mrb[0].mxu0 %v1211
        %v1250 = vpop.f32.mrb[0].mxu0
        %v1251 = vadd.f32 0.0, %v1250
        %v1252 = vpop.f32.mrb[0].mxu0
        %v1253 = vpop.f32.mrb[0].mxu0
        %v1254 = vpop.f32.mrb[0].mxu0
        %1255 = vdwg.mxu0
        %v1256 = vrcp.pop %v1207
        %v1257 = vmul.f32 %v1251, %v1256
        %v1258 = vpack.c.bf16 %v1257, %v1257
        %v1260 = vunpack.c.l.b16 %v1258
        %v1261 = vpack.c.b16 %v1260, %v1260
        %1262 = vrot.lane.b32.xlu0 %v1261, 28
        %v1263 = vpop.permute.xlu0 %1262
        %vm1265 = vcmask 257248
        %1266 = vst.msk [vmem:[#allocation2] sm:$0xf] %vm1265, %v1263
        %v1267 = vld [vmem:[#allocation2] sm:$0xf]
        %v1268 = vld [vmem:[%s2] sm:$0xf]
        %v1269 = vld [vmem:[%s2 + $0x4] sm:$0xf]
        %v1270 = vld [vmem:[%s2 + $0x8] sm:$0xf]
        %v1271 = vld [vmem:[%s2 + $0xc] sm:$0xf]
        %v1272 = vld [vmem:[%s3] sm:$0x1]
        %v1273 = vunpack.c.l.bf16 %v1272
        %v1274 = vlaneseq
        %v1275 = vshrl.u32 %v1274, 7
        %v1276 = vsub.s32 0, %v1275
        %v1277 = vrot.slane %v1273, %v1276
        %v1282 = vunpack.c.l.b16 %v1268
        %v1283 = vunpack.c.l.b16 %v1269
        %v1284 = vunpack.c.l.b16 %v1270
        %v1285 = vunpack.c.l.b16 %v1271
        %v1286 = vpack.c.b16 %v1283, %v1282
        %v1287 = vpack.c.b16 %v1285, %v1284
        %v1289 = vsel %vm238, %v1267, 0
        %v1292 = vsel %vm238, %v1286, 0
        %v1295 = vsel %vm238, %v1287, 0
        %1297 = vmatprep.subr.bf16.mxu0 0
        %1298 = vmatpush1.bf16.xpose.msra.mxu0 %v1292
        %1299 = vmatprep.subr.bf16.mxu0 0
        %1300 = vmatpush1.bf16.xpose.msra.mxu0 %v1295
        %1301 = vmatprep.subr.bf16.mxu0 0
        %1302 = vmatpush1.bf16.xpose.msra.mxu0 0
        %1303 = vmatprep.subr.bf16.mxu0 0
        %1304 = vmatpush1.bf16.xpose.msra.mxu0 0
        %1305 = vmatprep.subr.bf16.mxu0 0
        %1306 = vmatpush1.bf16.xpose.msra.mxu0 0
        %1307 = vmatprep.subr.bf16.mxu0 0
        %1308 = vmatpush1.bf16.xpose.msra.mxu0 0
        %1309 = vmatprep.subr.bf16.mxu0 0
        %1310 = vmatpush1.bf16.xpose.msra.mxu0 0
        %1311 = vmatprep.subr.bf16.mxu0 0
        %1312 = vmatpush1.bf16.xpose.msra.mxu0 0
        %1313 = vmatprep.subr.bf16.mxu0 0
        %1314 = vmatpush1.bf16.xpose.msra.mxu0 0
        %1315 = vmatprep.subr.bf16.mxu0 0
        %1316 = vmatpush1.bf16.xpose.msra.mxu0 0
        %1317 = vmatprep.subr.bf16.mxu0 0
        %1318 = vmatpush1.bf16.xpose.msra.mxu0 0
        %1319 = vmatprep.subr.bf16.mxu0 0
        %1320 = vmatpush1.bf16.xpose.msra.mxu0 0
        %1321 = vmatprep.subr.bf16.mxu0 0
        %1322 = vmatpush1.bf16.xpose.msra.mxu0 0
        %1323 = vmatprep.subr.bf16.mxu0 0
        %1324 = vmatpush1.bf16.xpose.msra.mxu0 0
        %1325 = vmatprep.subr.bf16.mxu0 0
        %1326 = vmatpush1.bf16.xpose.msra.mxu0 0
        %1327 = vmatprep.subr.bf16.mxu0 0
        %1328 = vmatpush1.bf16.xpose.msra.mxu0 0
        %1329 = vmatprep.mubr.bf16.mxu0 0
        %1330 = vmatmul.mubr.bf16.gmra.mrb[0].mxu0 %v1289
        %v1331 = vpop.f32.mrb[0].mxu0
        %v1332 = vadd.f32 %v1277, %v1331
        %v1333 = vpop.f32.mrb[0].mxu0
        %v1334 = vpop.f32.mrb[0].mxu0
        %v1335 = vpop.f32.mrb[0].mxu0
        %1336 = vdwg.mxu0
        %1337 = vst.msk [vmem:[%s188] sm:$0xff] %vm238, %v1332
        %s1338 = sand.u32 %s115, 1
        %s1339 = scalar_lea.sflag [#allocation4], %s1338
        %s1340 = sand.u32 %s115, 1
        %s1341 = smul.addr %s1340, 8
        %s1342 = scalar_lea.vmem [#allocation3], %s1341
        // Predicated region
        $region37: #{tpu_custom_call.1} parent=35 // pred_check
          %p1343 = pneg %p125
        $region38: #{tpu_custom_call.1} parent=35 // pred_check_branch
          %1345 = sbr.rel (%p1343) target = $region40
        $region39: #{tpu_custom_call.1} parent=35 // pred_region
          %s1347 = ssub.s32 128, 128
          %1348 = vsyncadd %s1339, %s1347
          %s1349 = smul.addr %s18, 128
          %s1350 = scalar_lea.hbm %s4, %s1349
          %s1352 = sshll.u32 %s1342, 4
          %s1353 = int_to_ptr.vmem [resolvable:$true] %s1352
          %1355 = dma.vmem_to_hbm [thread:$0]  %s1353, 128, %s1350, %s1339
        $region40: #{tpu_custom_call.1} parent=35 // pred_fallthru
          _
      $region36: #{tpu_custom_call.1} parent=5 // pred_fallthru
        _
      %p1356 = scmp.le.s32.totalorder 2, %s13
      // Predicated region
      $region41: #{tpu_custom_call.1} parent=5 // pred_check
        %p1357 = pneg %p1356
      $region42: #{tpu_custom_call.1} parent=5 // pred_check_branch
        %1359 = sbr.rel (%p1357) target = $region44
      $region43: #{tpu_custom_call.1} parent=5 // pred_region
        %s1360 = ssub.s32 %s13, 2
        // Predicated region
        $region45: #{tpu_custom_call.1} parent=43 // pred_check
          %p1361 = pneg %p131
        $region46: #{tpu_custom_call.1} parent=43 // pred_check_branch
          %1363 = sbr.rel (%p1361) target = $region48
        $region47: #{tpu_custom_call.1} parent=43 // pred_region
          %s1364 = sand.u32 %s116, 1
          %s1365 = scalar_lea.sflag [#allocation4], %s1364
          %s1366 = sand.u32 %s116, 1
          %s1367 = smul.addr %s1366, 8
          %s1368 = scalar_lea.vmem [#allocation3], %s1367
          %1369 = dma.done %s1365, 128
        $region48: #{tpu_custom_call.1} parent=43 // pred_fallthru
          _
      $region44: #{tpu_custom_call.1} parent=5 // pred_fallthru
        _
    $region6: #{tpu_custom_call.1} parent=1 // loop_footer
      %s17 = sadd.s32 1, %s13
    $region7: #{tpu_custom_call.1} parent=1 // loop_footer_branch
      %12 = sbr.rel target = $region3
    $region8: #{tpu_custom_call.1} parent=1 // loop_exit
      _
    %1370 = vsyncpa [#allocation4], 1
    %s1371 = scalar_lea.sflag [#allocation4], 1
    %1372 = vsyncpa %s1371, 1

</llo_original>
